<compile_context>
chip_gen: v6e
topology: v6e:2x2x1
jax: 0.10.0
libtpu: 0.0.40
codegen_flags: <defaults>
</compile_context>

<pallas_src>
import functools

import jax
import jax.numpy as jnp
from jax.experimental import pallas as pl
from jax.experimental.pallas import tpu as pltpu

C_FEAT = 512
ATT_DIMS = (64, 16, 8, 1)   # attention 1x1-conv channel sizes
HIDDEN = 256
CLASSES = 5


# ----------------------------------------------------------------------------
# Fused kernel: attention head + masked GAP + dense classifier.
#   x block: (Bt, H*W, 512) bf16 (channel-last), read once from HBM.
# ----------------------------------------------------------------------------
def kenet_kernel(x_ref,
                 w1_ref, b1_ref, w2_ref, b2_ref, w3_ref, b3_ref,
                 w4t_ref, b4_ref, wd1_ref, bd1_ref, wd2_ref, bd2_ref,
                 o_ref, *, H, W, C, Bt):
    HW = H * W
    x = x_ref[...]                                    # (Bt, HW, C) bf16
    xm = x.reshape(Bt * HW, C)                        # free leading-dim merge

    # Attention head: 1x1 convs == per-pixel matmuls over channels.
    # Eval-mode BatchNorm2d(512) was folded into (w1, b1) on the host.
    h = jnp.dot(xm, w1_ref[...], preferred_element_type=jnp.float32) + b1_ref[...]
    h = jnp.maximum(h, 0.0)
    h = jnp.maximum(
        jnp.dot(h, w2_ref[...], preferred_element_type=jnp.float32) + b2_ref[...], 0.0)
    h = jnp.maximum(
        jnp.dot(h, w3_ref[...], preferred_element_type=jnp.float32) + b3_ref[...], 0.0)
    # Last 1x1 conv (8 -> 1) as elementwise multiply + lane reduction
    # (w4 passed transposed, shape (1, 8)).
    logits = jnp.sum(h * w4t_ref[...], axis=1, keepdims=True) + b4_ref[...]
    a = jax.nn.sigmoid(logits)                        # (Bt*HW, 1)

    # up_c2 (constant-1 weight, channel broadcast) + torch.matmul(atten, x)
    # + full-extent avg pools, collapsed algebraically:
    #   gap_feat[b,c] ∝ sum_m colsum_a[b,m] * rowsum_x[b,m,c]
    #   gap_mask[b]   ∝ sum(a[b]);  the common 1/(H*W) cancels in the ratio.
    colsum_a = jnp.sum(a.reshape(Bt, H, W, 1), axis=1)                       # (Bt, W, 1)
    rowsum_x = jnp.sum(x.reshape(Bt, H, W, C).astype(jnp.float32), axis=2)   # (Bt, H, C)
    gap_feat = jnp.sum(colsum_a * rowsum_x, axis=1)   # (Bt, C)   (requires H == W)
    gap_mask = jnp.sum(colsum_a, axis=1)              # (Bt, 1)
    gap = gap_feat * pl.reciprocal(gap_mask, approx=True)

    d1 = jnp.dot(gap, wd1_ref[...], preferred_element_type=jnp.float32) + bd1_ref[...]
    # TODO(synk): nn.Dropout(0.5) is the identity in eval mode; no kernel op.
    out = jnp.dot(d1, wd2_ref[...], preferred_element_type=jnp.float32) + bd2_ref[...]
    o_ref[...] = out.reshape(Bt, 1, out.shape[-1])    # (Bt, 1, CLASSES)


# ----------------------------------------------------------------------------
# Wrapper: layout prep, BN folding, batch-tile selection, pallas_call plumbing.
# ----------------------------------------------------------------------------
def _pick_batch_tile(n, hw, c, max_block_bytes=2 << 20):
    """Largest divisor of n whose bf16 x-block stays <= max_block_bytes,
    preferring >= 2 grid steps so both v7x TensorCores get work."""
    limit = max(1, max_block_bytes // (hw * c * 2))
    divs = [d for d in range(1, n + 1) if n % d == 0 and d <= limit]
    multi = [d for d in divs if n // d >= 2]
    return max(multi) if multi else max(divs)


def kenet_head_forward(x_nchw, p):
    N, C, H, W = x_nchw.shape
    assert H == W, "torch.matmul(atten, x) requires a square feature map"
    HW = H * W

    # TODO(synk): ideally the backbone emits NHWC directly so this transpose
    # (one extra HBM pass, fused here with the bf16 downcast) disappears.
    x_pix = jnp.transpose(x_nchw, (0, 2, 3, 1)).reshape(N, HW, C).astype(jnp.bfloat16)

    # Fold eval-mode BatchNorm2d into the first 1x1 conv:
    #   (x*s + t) @ W1 + b1 == x @ (s[:,None] * W1) + (t @ W1 + b1)
    w1_eff = (p['bn_scale'].reshape(C, 1) * p['w1']).astype(jnp.bfloat16)
    b1_eff = (jnp.dot(p['bn_bias'], p['w1']) + p['b1']).astype(jnp.float32)

    bt = _pick_batch_tile(N, HW, C)
    grid = (N // bt,)

    params = [w1_eff, b1_eff, p['w2'], p['b2'], p['w3'], p['b3'],
              p['w4'].T, p['b4'], p['wd1'], p['bd1'], p['wd2'], p['bd2']]
    in_specs = ([pl.BlockSpec((bt, HW, C), lambda n: (n, 0, 0))]
                + [pl.BlockSpec(q.shape, lambda n: (0, 0)) for q in params])

    out3 = pl.pallas_call(
        functools.partial(kenet_kernel, H=H, W=W, C=C, Bt=bt),
        out_shape=jax.ShapeDtypeStruct((N, 1, CLASSES), jnp.float32),
        grid_spec=pltpu.PrefetchScalarGridSpec(
            num_scalar_prefetch=0,
            grid=grid,
            in_specs=in_specs,
            out_specs=pl.BlockSpec((bt, 1, CLASSES), lambda n: (n, 0, 0))),
        compiler_params=pltpu.CompilerParams(
            dimension_semantics=("parallel",),
            vmem_limit_bytes=32 * 1024 * 1024),
    )(x_pix, *params)

    # torch.squeeze on the (N, 512, 1, 1)-derived tensors -> (N, classes)
    return out3.reshape(N, CLASSES)


# ----------------------------------------------------------------------------
# Deterministic parameter init (synthetic; shapes from KeNet.__init__)
# ----------------------------------------------------------------------------
def init_params(key):
    ks = jax.random.split(key, 12)
    C = C_FEAT

    def lin(k, fin, fout):
        return jax.random.normal(k, (fin, fout), jnp.float32) / jnp.sqrt(float(fin))

    def bias(k, fout):
        return 0.05 * jax.random.normal(k, (1, fout), jnp.float32)

    # BatchNorm2d(512) eval-mode params folded to scale/shift.
    gamma = 1.0 + 0.1 * jax.random.normal(ks[0], (1, C), jnp.float32)
    beta = 0.1 * jax.random.normal(ks[1], (1, C), jnp.float32)
    rmean = 0.1 * jax.random.normal(ks[2], (1, C), jnp.float32)
    rvar = 1.0 + 0.5 * jax.random.uniform(ks[3], (1, C), jnp.float32)
    eps = 1e-5
    bn_scale = gamma / jnp.sqrt(rvar + eps)
    bn_bias = beta - rmean * bn_scale

    params = dict(bn_scale=bn_scale, bn_bias=bn_bias)
    dims = (C,) + ATT_DIMS
    kw = jax.random.split(ks[4], 4)
    kb = jax.random.split(ks[5], 4)
    for i in range(4):
        params[f'w{i + 1}'] = lin(kw[i], dims[i], dims[i + 1])
        params[f'b{i + 1}'] = bias(kb[i], dims[i + 1])
    # up_c2: Conv2d(1, 512, 1, bias=False) with constant weight 1 -> pure
    # channel broadcast; handled implicitly (algebraic collapse) in the kernel.
    params['wd1'] = lin(ks[6], C, HIDDEN)
    params['bd1'] = bias(ks[7], HIDDEN)
    params['wd2'] = lin(ks[8], HIDDEN, CLASSES)
    params['bd2'] = bias(ks[9], CLASSES)
    return params


# ----------------------------------------------------------------------------
# Pure-JAX reference (mirrors the PyTorch forward, NCHW) for verification
# ----------------------------------------------------------------------------
def kenet_head_reference(x_nchw, p):
    N, C, H, W = x_nchw.shape
    hi = jax.lax.Precision.HIGHEST
    x = x_nchw.astype(jnp.float32)
    xn = x * p['bn_scale'].reshape(1, C, 1, 1) + p['bn_bias'].reshape(1, C, 1, 1)

    def conv1x1(t, w, b):   # w: (cin, cout), b: (1, cout)
        return (jnp.einsum('nchw,cd->ndhw', t, w, precision=hi)
                + b.reshape(1, -1, 1, 1))

    h = jax.nn.relu(conv1x1(xn, p['w1'], p['b1']))
    h = jax.nn.relu(conv1x1(h, p['w2'], p['b2']))
    h = jax.nn.relu(conv1x1(h, p['w3'], p['b3']))
    att = jax.nn.sigmoid(conv1x1(h, p['w4'], p['b4']))        # (N, 1, H, W)
    att512 = jnp.broadcast_to(att, (N, C, H, W))              # up_c2 (weight == 1)
    mask = jnp.matmul(att512, x, precision=hi)                # (N, C, H, W)
    gap_feat = jnp.mean(mask, axis=(2, 3))                    # (N, C)
    gap_mask = jnp.mean(att512, axis=(2, 3))                  # (N, C)
    gap = gap_feat / gap_mask
    d1 = jnp.dot(gap, p['wd1'], precision=hi) + p['bd1']
    return jnp.dot(d1, p['wd2'], precision=hi) + p['bd2']     # (N, CLASSES)


if __name__ == "__main__":
    key = jax.random.PRNGKey(0)
    kx, kp = jax.random.split(key)
    N, H, W = 2, 8, 8
    # Synthetic ResNet-18 feature map (NCHW), small spatial size.
    x = jax.random.normal(kx, (N, C_FEAT, H, W), jnp.float32)
    params = init_params(kp)

    out = kenet_head_forward(x, params)
    out = jax.block_until_ready(out)

    ref = kenet_head_reference(x, params)
    assert out.shape == (N, CLASSES), out.shape
    assert bool(jnp.all(jnp.isfinite(out)))
    assert bool(jnp.allclose(out, ref, atol=2e-2, rtol=2e-2)), (out, ref)
    print("KERNEL_OK")
</pallas_src>

<mosaic_0001>
module attributes {stable_mosaic.version = 11 : i64} {
  func.func @kenet_kernel(%arg0: i32, %arg1: memref<1x64x512xbf16, #tpu.memory_space<vmem>>, %arg2: memref<512x64xbf16, #tpu.memory_space<vmem>>, %arg3: memref<1x64xf32, #tpu.memory_space<vmem>>, %arg4: memref<64x16xf32, #tpu.memory_space<vmem>>, %arg5: memref<1x16xf32, #tpu.memory_space<vmem>>, %arg6: memref<16x8xf32, #tpu.memory_space<vmem>>, %arg7: memref<1x8xf32, #tpu.memory_space<vmem>>, %arg8: memref<1x8xf32, #tpu.memory_space<vmem>>, %arg9: memref<1x1xf32, #tpu.memory_space<vmem>>, %arg10: memref<512x256xf32, #tpu.memory_space<vmem>>, %arg11: memref<1x256xf32, #tpu.memory_space<vmem>>, %arg12: memref<256x5xf32, #tpu.memory_space<vmem>>, %arg13: memref<1x5xf32, #tpu.memory_space<vmem>>, %arg14: memref<1x1x5xf32, #tpu.memory_space<vmem>>) attributes {dimension_semantics = [#tpu.dimension_semantics<parallel>], iteration_bounds = array<i64: 2>, scalar_prefetch = 0 : i64, scratch_operands = 0 : i64, tpu.core_type = #tpu.core_type<tc>, window_params = [{transform_indices = @transform_0, window_bounds = array<i64: 1, 64, 512>}, {pipeline_mode = #tpu.pipeline_mode<synchronous>, transform_indices = @transform_1, window_bounds = array<i64: 512, 64>}, {pipeline_mode = #tpu.pipeline_mode<synchronous>, transform_indices = @transform_2, window_bounds = array<i64: 1, 64>}, {pipeline_mode = #tpu.pipeline_mode<synchronous>, transform_indices = @transform_3, window_bounds = array<i64: 64, 16>}, {pipeline_mode = #tpu.pipeline_mode<synchronous>, transform_indices = @transform_4, window_bounds = array<i64: 1, 16>}, {pipeline_mode = #tpu.pipeline_mode<synchronous>, transform_indices = @transform_5, window_bounds = array<i64: 16, 8>}, {pipeline_mode = #tpu.pipeline_mode<synchronous>, transform_indices = @transform_6, window_bounds = array<i64: 1, 8>}, {pipeline_mode = #tpu.pipeline_mode<synchronous>, transform_indices = @transform_7, window_bounds = array<i64: 1, 8>}, {pipeline_mode = #tpu.pipeline_mode<synchronous>, transform_indices = @transform_8, window_bounds = array<i64: 1, 1>}, {pipeline_mode = #tpu.pipeline_mode<synchronous>, transform_indices = @transform_9, window_bounds = array<i64: 512, 256>}, {pipeline_mode = #tpu.pipeline_mode<synchronous>, transform_indices = @transform_10, window_bounds = array<i64: 1, 256>}, {pipeline_mode = #tpu.pipeline_mode<synchronous>, transform_indices = @transform_11, window_bounds = array<i64: 256, 5>}, {pipeline_mode = #tpu.pipeline_mode<synchronous>, transform_indices = @transform_12, window_bounds = array<i64: 1, 5>}, {transform_indices = @transform_13, window_bounds = array<i64: 1, 1, 5>}]} {
    %c0 = arith.constant 0 : index
    %c0_0 = arith.constant 0 : index
    %c0_1 = arith.constant 0 : index
    %0 = vector.load %arg1[%c0, %c0_0, %c0_1] : memref<1x64x512xbf16, #tpu.memory_space<vmem>>, vector<1x64x512xbf16>
    %1 = vector.shape_cast %0 : vector<1x64x512xbf16> to vector<64x512xbf16>
    %c0_2 = arith.constant 0 : index
    %c0_3 = arith.constant 0 : index
    %2 = vector.load %arg2[%c0_2, %c0_3] : memref<512x64xbf16, #tpu.memory_space<vmem>>, vector<512x64xbf16>
    %cst = arith.constant dense<0.000000e+00> : vector<64x64xf32>
    %3 = tpu.matmul %1, %2, %cst {dimension_numbers = #tpu.dot_dimension_numbers<[1], [0], [0], [1], [0, 0, 1, 1], [], []>} : vector<64x512xbf16>, vector<512x64xbf16>, vector<64x64xf32> -> vector<64x64xf32>
    %c0_4 = arith.constant 0 : index
    %c0_5 = arith.constant 0 : index
    %4 = vector.load %arg3[%c0_4, %c0_5] : memref<1x64xf32, #tpu.memory_space<vmem>>, vector<1x64xf32>
    %5 = vector.broadcast %4 : vector<1x64xf32> to vector<64x64xf32>
    %6 = arith.addf %3, %5 : vector<64x64xf32>
    %cst_6 = arith.constant 0.000000e+00 : f32
    %7 = vector.broadcast %cst_6 : f32 to vector<64x64xf32>
    %8 = arith.maximumf %6, %7 : vector<64x64xf32>
    %c0_7 = arith.constant 0 : index
    %c0_8 = arith.constant 0 : index
    %9 = vector.load %arg4[%c0_7, %c0_8] : memref<64x16xf32, #tpu.memory_space<vmem>>, vector<64x16xf32>
    %cst_9 = arith.constant dense<0.000000e+00> : vector<64x16xf32>
    %10 = tpu.matmul %8, %9, %cst_9 {dimension_numbers = #tpu.dot_dimension_numbers<[1], [0], [0], [1], [0, 0, 1, 1], [], []>} : vector<64x64xf32>, vector<64x16xf32>, vector<64x16xf32> -> vector<64x16xf32>
    %c0_10 = arith.constant 0 : index
    %c0_11 = arith.constant 0 : index
    %11 = vector.load %arg5[%c0_10, %c0_11] : memref<1x16xf32, #tpu.memory_space<vmem>>, vector<1x16xf32>
    %12 = vector.broadcast %11 : vector<1x16xf32> to vector<64x16xf32>
    %13 = arith.addf %10, %12 : vector<64x16xf32>
    %cst_12 = arith.constant 0.000000e+00 : f32
    %14 = vector.broadcast %cst_12 : f32 to vector<64x16xf32>
    %15 = arith.maximumf %13, %14 : vector<64x16xf32>
    %c0_13 = arith.constant 0 : index
    %c0_14 = arith.constant 0 : index
    %16 = vector.load %arg6[%c0_13, %c0_14] : memref<16x8xf32, #tpu.memory_space<vmem>>, vector<16x8xf32>
    %cst_15 = arith.constant dense<0.000000e+00> : vector<64x8xf32>
    %17 = tpu.matmul %15, %16, %cst_15 {dimension_numbers = #tpu.dot_dimension_numbers<[1], [0], [0], [1], [0, 0, 1, 1], [], []>} : vector<64x16xf32>, vector<16x8xf32>, vector<64x8xf32> -> vector<64x8xf32>
    %c0_16 = arith.constant 0 : index
    %c0_17 = arith.constant 0 : index
    %18 = vector.load %arg7[%c0_16, %c0_17] : memref<1x8xf32, #tpu.memory_space<vmem>>, vector<1x8xf32>
    %19 = vector.broadcast %18 : vector<1x8xf32> to vector<64x8xf32>
    %20 = arith.addf %17, %19 : vector<64x8xf32>
    %cst_18 = arith.constant 0.000000e+00 : f32
    %21 = vector.broadcast %cst_18 : f32 to vector<64x8xf32>
    %22 = arith.maximumf %20, %21 : vector<64x8xf32>
    %c0_19 = arith.constant 0 : index
    %c0_20 = arith.constant 0 : index
    %23 = vector.load %arg8[%c0_19, %c0_20] : memref<1x8xf32, #tpu.memory_space<vmem>>, vector<1x8xf32>
    %24 = vector.broadcast %23 : vector<1x8xf32> to vector<64x8xf32>
    %25 = arith.mulf %22, %24 : vector<64x8xf32>
    %cst_21 = arith.constant dense<0.000000e+00> : vector<64xf32>
    %26 = vector.multi_reduction <add>, %25, %cst_21 [1] : vector<64x8xf32> to vector<64xf32>
    %27 = vector.shape_cast %26 : vector<64xf32> to vector<64x1xf32>
    %c0_22 = arith.constant 0 : index
    %c0_23 = arith.constant 0 : index
    %28 = vector.load %arg9[%c0_22, %c0_23] : memref<1x1xf32, #tpu.memory_space<vmem>>, vector<1x1xf32>
    %29 = vector.broadcast %28 : vector<1x1xf32> to vector<64x1xf32>
    %30 = arith.addf %27, %29 : vector<64x1xf32>
    %31 = arith.negf %30 : vector<64x1xf32>
    %32 = math.exp %31 : vector<64x1xf32>
    %cst_24 = arith.constant 1.000000e+00 : f32
    %33 = vector.broadcast %cst_24 : f32 to vector<64x1xf32>
    %34 = arith.addf %33, %32 : vector<64x1xf32>
    %35 = arith.divf %33, %34 : vector<64x1xf32>
    %36 = vector.shape_cast %35 : vector<64x1xf32> to vector<1x8x8x1xf32>
    %cst_25 = arith.constant dense<0.000000e+00> : vector<1x8x1xf32>
    %37 = vector.multi_reduction <add>, %36, %cst_25 [1] : vector<1x8x8x1xf32> to vector<1x8x1xf32>
    %38 = vector.shape_cast %0 : vector<1x64x512xbf16> to vector<1x8x8x512xbf16>
    %39 = arith.extf %38 : vector<1x8x8x512xbf16> to vector<1x8x8x512xf32>
    %cst_26 = arith.constant dense<0.000000e+00> : vector<1x8x512xf32>
    %40 = vector.multi_reduction <add>, %39, %cst_26 [2] : vector<1x8x8x512xf32> to vector<1x8x512xf32>
    %41 = vector.broadcast %37 : vector<1x8x1xf32> to vector<1x8x512xf32>
    %42 = arith.mulf %41, %40 : vector<1x8x512xf32>
    %cst_27 = arith.constant dense<0.000000e+00> : vector<1x512xf32>
    %43 = vector.multi_reduction <add>, %42, %cst_27 [1] : vector<1x8x512xf32> to vector<1x512xf32>
    %cst_28 = arith.constant dense<0.000000e+00> : vector<1x1xf32>
    %44 = vector.multi_reduction <add>, %37, %cst_28 [1] : vector<1x8x1xf32> to vector<1x1xf32>
    %45 = tpu.reciprocal %44 {approx = true} : vector<1x1xf32> -> vector<1x1xf32>
    %46 = vector.broadcast %45 : vector<1x1xf32> to vector<1x512xf32>
    %47 = arith.mulf %43, %46 : vector<1x512xf32>
    %c0_29 = arith.constant 0 : index
    %c0_30 = arith.constant 0 : index
    %48 = vector.load %arg10[%c0_29, %c0_30] : memref<512x256xf32, #tpu.memory_space<vmem>>, vector<512x256xf32>
    %cst_31 = arith.constant dense<0.000000e+00> : vector<1x256xf32>
    %49 = tpu.matmul %47, %48, %cst_31 {dimension_numbers = #tpu.dot_dimension_numbers<[1], [0], [0], [1], [0, 0, 1, 1], [], []>} : vector<1x512xf32>, vector<512x256xf32>, vector<1x256xf32> -> vector<1x256xf32>
    %c0_32 = arith.constant 0 : index
    %c0_33 = arith.constant 0 : index
    %50 = vector.load %arg11[%c0_32, %c0_33] : memref<1x256xf32, #tpu.memory_space<vmem>>, vector<1x256xf32>
    %51 = arith.addf %49, %50 : vector<1x256xf32>
    %c0_34 = arith.constant 0 : index
    %c0_35 = arith.constant 0 : index
    %52 = vector.load %arg12[%c0_34, %c0_35] : memref<256x5xf32, #tpu.memory_space<vmem>>, vector<256x5xf32>
    %cst_36 = arith.constant dense<0.000000e+00> : vector<1x5xf32>
    %53 = tpu.matmul %51, %52, %cst_36 {dimension_numbers = #tpu.dot_dimension_numbers<[1], [0], [0], [1], [0, 0, 1, 1], [], []>} : vector<1x256xf32>, vector<256x5xf32>, vector<1x5xf32> -> vector<1x5xf32>
    %c0_37 = arith.constant 0 : index
    %c0_38 = arith.constant 0 : index
    %54 = vector.load %arg13[%c0_37, %c0_38] : memref<1x5xf32, #tpu.memory_space<vmem>>, vector<1x5xf32>
    %55 = arith.addf %53, %54 : vector<1x5xf32>
    %56 = vector.shape_cast %55 : vector<1x5xf32> to vector<1x1x5xf32>
    %c0_39 = arith.constant 0 : index
    %c0_40 = arith.constant 0 : index
    %c0_41 = arith.constant 0 : index
    %57 = vector.load %arg14[%c0_39, %c0_40, %c0_41] : memref<1x1x5xf32, #tpu.memory_space<vmem>>, vector<1x1x5xf32>
    tpu.vector_store %arg14[%c0_39, %c0_40, %c0_41], %56 {strides = array<i32>} : memref<1x1x5xf32, #tpu.memory_space<vmem>>, vector<1x1x5xf32>,
    return
  }
  func.func @transform_0(%arg0: i32) -> (i32, i32, i32) {
    %c0_i32 = arith.constant 0 : i32
    %c0_i32_0 = arith.constant 0 : i32
    %c0_i32_1 = arith.constant 0 : i32
    return %arg0, %c0_i32, %c0_i32_0 : i32, i32, i32
  }
  func.func @transform_1(%arg0: i32) -> (i32, i32) {
    %c0_i32 = arith.constant 0 : i32
    %c0_i32_0 = arith.constant 0 : i32
    %c0_i32_1 = arith.constant 0 : i32
    return %c0_i32, %c0_i32_0 : i32, i32
  }
  func.func @transform_2(%arg0: i32) -> (i32, i32) {
    %c0_i32 = arith.constant 0 : i32
    %c0_i32_0 = arith.constant 0 : i32
    %c0_i32_1 = arith.constant 0 : i32
    return %c0_i32, %c0_i32_0 : i32, i32
  }
  func.func @transform_3(%arg0: i32) -> (i32, i32) {
    %c0_i32 = arith.constant 0 : i32
    %c0_i32_0 = arith.constant 0 : i32
    %c0_i32_1 = arith.constant 0 : i32
    return %c0_i32, %c0_i32_0 : i32, i32
  }
  func.func @transform_4(%arg0: i32) -> (i32, i32) {
    %c0_i32 = arith.constant 0 : i32
    %c0_i32_0 = arith.constant 0 : i32
    %c0_i32_1 = arith.constant 0 : i32
    return %c0_i32, %c0_i32_0 : i32, i32
  }
  func.func @transform_5(%arg0: i32) -> (i32, i32) {
    %c0_i32 = arith.constant 0 : i32
    %c0_i32_0 = arith.constant 0 : i32
    %c0_i32_1 = arith.constant 0 : i32
    return %c0_i32, %c0_i32_0 : i32, i32
  }
  func.func @transform_6(%arg0: i32) -> (i32, i32) {
    %c0_i32 = arith.constant 0 : i32
    %c0_i32_0 = arith.constant 0 : i32
    %c0_i32_1 = arith.constant 0 : i32
    return %c0_i32, %c0_i32_0 : i32, i32
  }
  func.func @transform_7(%arg0: i32) -> (i32, i32) {
    %c0_i32 = arith.constant 0 : i32
    %c0_i32_0 = arith.constant 0 : i32
    %c0_i32_1 = arith.constant 0 : i32
    return %c0_i32, %c0_i32_0 : i32, i32
  }
  func.func @transform_8(%arg0: i32) -> (i32, i32) {
    %c0_i32 = arith.constant 0 : i32
    %c0_i32_0 = arith.constant 0 : i32
    %c0_i32_1 = arith.constant 0 : i32
    return %c0_i32, %c0_i32_0 : i32, i32
  }
  func.func @transform_9(%arg0: i32) -> (i32, i32) {
    %c0_i32 = arith.constant 0 : i32
    %c0_i32_0 = arith.constant 0 : i32
    %c0_i32_1 = arith.constant 0 : i32
    return %c0_i32, %c0_i32_0 : i32, i32
  }
  func.func @transform_10(%arg0: i32) -> (i32, i32) {
    %c0_i32 = arith.constant 0 : i32
    %c0_i32_0 = arith.constant 0 : i32
    %c0_i32_1 = arith.constant 0 : i32
    return %c0_i32, %c0_i32_0 : i32, i32
  }
  func.func @transform_11(%arg0: i32) -> (i32, i32) {
    %c0_i32 = arith.constant 0 : i32
    %c0_i32_0 = arith.constant 0 : i32
    %c0_i32_1 = arith.constant 0 : i32
    return %c0_i32, %c0_i32_0 : i32, i32
  }
  func.func @transform_12(%arg0: i32) -> (i32, i32) {
    %c0_i32 = arith.constant 0 : i32
    %c0_i32_0 = arith.constant 0 : i32
    %c0_i32_1 = arith.constant 0 : i32
    return %c0_i32, %c0_i32_0 : i32, i32
  }
  func.func @transform_13(%arg0: i32) -> (i32, i32, i32) {
    %c0_i32 = arith.constant 0 : i32
    %c0_i32_0 = arith.constant 0 : i32
    %c0_i32_1 = arith.constant 0 : i32
    return %arg0, %c0_i32, %c0_i32_0 : i32, i32, i32
  }
}

</mosaic_0001>

<llo_original>
// kernel: tpu_custom_call.1
$region0: #{tpu_custom_call.1}
  #allocation0 [shape = 'u32[]', space=smem, size = 0x4, offset = 0x4, fixed_abs, tag = 'smem constant byte address 0x4 - core index']
  #allocation1 [shape = 'u32[144,128]{1,0:T(1,128)}', space=vmem, size = 0x12000, scoped, tag = 'internal scratch']
  #allocation2 [shape = 'f32[1,1]{1,0:T(1,128)S(1)}', space=vmem, size = 0x200, scoped, tag = 'scoped memory for tpu_custom_call.1']
  %s0 = inlined_call_operand.vmem [shape: bf16[2,64,512], index: 0, kind: input, shape index: {}]
  %s1 = inlined_call_operand.vmem [shape: bf16[512,64], index: 1, kind: input, shape index: {}]
  %s2 = inlined_call_operand.vmem [shape: f32[1,64], index: 2, kind: input, shape index: {}]
  %s3 = inlined_call_operand.vmem [shape: f32[64,16], index: 3, kind: input, shape index: {}]
  %s4 = inlined_call_operand.vmem [shape: f32[1,16], index: 4, kind: input, shape index: {}]
  %s5 = inlined_call_operand.vmem [shape: f32[16,8], index: 5, kind: input, shape index: {}]
  %s6 = inlined_call_operand.vmem [shape: f32[1,8], index: 6, kind: input, shape index: {}]
  %s7 = inlined_call_operand.vmem [shape: f32[1,8], index: 7, kind: input, shape index: {}]
  %s8 = inlined_call_operand.<no memory space> [shape: f32[1,1], index: 8, kind: input, shape index: {}]
  %s9 = inlined_call_operand.hbm [shape: f32[512,256], index: 9, kind: input, shape index: {}]
  %s10 = inlined_call_operand.vmem [shape: f32[1,256], index: 10, kind: input, shape index: {}]
  %s11 = inlined_call_operand.vmem [shape: f32[256,5], index: 11, kind: input, shape index: {}]
  %s12 = inlined_call_operand.vmem [shape: f32[1,5], index: 12, kind: input, shape index: {}]
  %s13 = inlined_call_operand.hbm [shape: f32[2,1,5], index: 13, kind: output, shape index: {}]
  %s14 = sld [smem:[#allocation0]]
  $region89: #{tpu_custom_call.1} parent=0
    _
  %s16 = ssub.s32 1, %s14
  %s17 = scalar_select 0, %s16, %s14
  %v18 = vstv %s8
  %19 = vst [vmem:[#allocation2] sm:$0x1] %v18
  $region1: #{tpu_custom_call.1} parent=0
    #allocation3 [shape = 'u8[524288]{0}', space=vmem, size = 0x80000, scoped, tag = 'input window, operand 9, single buffered']
    #allocation4 [shape = 's32[2]{0}', space=sflag, size = 0x8, scoped, tag = 'scoped memory for tpu_custom_call.1']
    #allocation5 [shape = 's32[2]{0}', space=sflag, size = 0x8, scoped, tag = 'scoped memory for tpu_custom_call.1']
    #allocation6 [shape = 'u8[1024]{0}', space=vmem, size = 0x400, scoped, tag = 'output window, operand 0']
    %20 = vsyncpa [#allocation4], 0
    %21 = vsyncpa [#allocation5], 0
    %s22 = scalar_lea.sflag [#allocation5], 1
    %23 = vsyncpa %s22, 0
    loop: start=0, step=1, limit=4
    $region2: #{tpu_custom_call.1} parent=1 // loop_pre_header
      _
    $region3: #{tpu_custom_call.1} parent=1 // loop_header
      %s25 = sphi 0, %s29
      %p26 = scmp.ge.s32.totalorder %s25, 4
      %s35 = sphi 0, %s37
      %s38 = sphi 0, %s35
      %s39 = sphi 0, %s38
      %s55 = sphi 0, %s39
      %s59 = sphi 0, %s59
      %s61 = sphi 0, %s59
      %s62 = sphi 0, %s61
      %s76 = sphi 0, %s62
      %s80 = sphi 0, %s80
      %s82 = sphi 0, %s80
      %s83 = sphi 0, %s82
      %s97 = sphi 0, %s83
      %s101 = sphi 0, %s101
      %s103 = sphi 0, %s101
      %s104 = sphi 0, %s103
      %s118 = sphi 0, %s104
      %s122 = sphi 0, %s122
      %s124 = sphi 0, %s122
      %s125 = sphi 0, %s124
      %s139 = sphi 0, %s125
      %s143 = sphi 0, %s143
      %s145 = sphi 0, %s143
      %s146 = sphi 0, %s145
      %s160 = sphi 0, %s146
      %s164 = sphi 0, %s164
      %s166 = sphi 0, %s164
      %s167 = sphi 0, %s166
      %s181 = sphi 0, %s167
      %s185 = sphi 0, %s185
      %s187 = sphi 0, %s185
      %s188 = sphi 0, %s187
      %s202 = sphi 0, %s188
      %s206 = sphi 0, %s206
      %s208 = sphi 0, %s206
      %s209 = sphi 0, %s208
      %s223 = sphi 0, %s209
      %s227 = sphi 0, %s227
      %s229 = sphi 0, %s227
      %s230 = sphi 0, %s229
      %s244 = sphi 0, %s230
      %s248 = sphi 0, %s248
      %s250 = sphi 0, %s248
      %s251 = sphi 0, %s250
      %s265 = sphi 0, %s251
      %s269 = sphi 0, %s269
      %s271 = sphi 0, %s269
      %s272 = sphi 0, %s271
      %s286 = sphi 0, %s272
      %s290 = sphi 0, %s290
      %s292 = sphi 0, %s290
      %s293 = sphi 0, %s292
      %s307 = sphi 0, %s293
      %s313 = sphi 0, %s315
      %s316 = sphi 0, %s313
      %s317 = sphi 0, %s316
      %s333 = sphi 0, %s317
    $region4: #{tpu_custom_call.1} parent=1 // loop_header_branch
      %28 = sbr.rel (%p26) target = $region8
    $region5: #{tpu_custom_call.1} parent=1 // loop_body
      %s30 = ssub.s32 %s25, 1
      %s31 = ssub.s32 %s25, 2
      %s32 = sadd.s32 %s25, 1
      %s33 = ssub.s32 %s25, %s32
      %p34 = scmp.eq.s32.totalorder %s33, 0
      %s36 = sadd.s32 %s35, 1
      %s37 = scalar_select %p34, %s35, %s36
      %p40 = pneg %p34
      %p41 = scmp.eq.s32.totalorder %s25, 1
      %p42 = por %p40, %p41
      %p43 = scmp.ne.s32.totalorder %s35, %s38
      %p44 = scmp.eq.s32.totalorder %s25, 0
      %p45 = por %p43, %p44
      %p46 = scmp.ne.s32.totalorder %s35, %s38
      %p47 = scmp.eq.s32.totalorder %s30, 1
      %p48 = por %p46, %p47
      %p49 = scmp.ne.s32.totalorder %s38, %s39
      %p50 = scmp.eq.s32.totalorder %s30, 0
      %p51 = por %p49, %p50
      %p52 = scmp.ne.s32.totalorder %s38, %s39
      %p53 = scmp.eq.s32.totalorder %s31, 1
      %p54 = por %p52, %p53
      %p56 = scmp.ne.s32.totalorder %s39, %s55
      %p57 = scmp.eq.s32.totalorder %s31, 0
      %p58 = por %p56, %p57
      %s60 = sadd.s32 %s59, 1
      %p63 = scmp.eq.s32.totalorder %s25, 1
      %p64 = scmp.ne.s32.totalorder %s59, %s61
      %p65 = scmp.eq.s32.totalorder %s25, 0
      %p66 = por %p64, %p65
      %p67 = scmp.ne.s32.totalorder %s59, %s61
      %p68 = scmp.eq.s32.totalorder %s30, 1
      %p69 = por %p67, %p68
      %p70 = scmp.ne.s32.totalorder %s61, %s62
      %p71 = scmp.eq.s32.totalorder %s30, 0
      %p72 = por %p70, %p71
      %p73 = scmp.ne.s32.totalorder %s61, %s62
      %p74 = scmp.eq.s32.totalorder %s31, 1
      %p75 = por %p73, %p74
      %p77 = scmp.ne.s32.totalorder %s62, %s76
      %p78 = scmp.eq.s32.totalorder %s31, 0
      %p79 = por %p77, %p78
      %s81 = sadd.s32 %s80, 1
      %p84 = scmp.eq.s32.totalorder %s25, 1
      %p85 = scmp.ne.s32.totalorder %s80, %s82
      %p86 = scmp.eq.s32.totalorder %s25, 0
      %p87 = por %p85, %p86
      %p88 = scmp.ne.s32.totalorder %s80, %s82
      %p89 = scmp.eq.s32.totalorder %s30, 1
      %p90 = por %p88, %p89
      %p91 = scmp.ne.s32.totalorder %s82, %s83
      %p92 = scmp.eq.s32.totalorder %s30, 0
      %p93 = por %p91, %p92
      %p94 = scmp.ne.s32.totalorder %s82, %s83
      %p95 = scmp.eq.s32.totalorder %s31, 1
      %p96 = por %p94, %p95
      %p98 = scmp.ne.s32.totalorder %s83, %s97
      %p99 = scmp.eq.s32.totalorder %s31, 0
      %p100 = por %p98, %p99
      %s102 = sadd.s32 %s101, 1
      %p105 = scmp.eq.s32.totalorder %s25, 1
      %p106 = scmp.ne.s32.totalorder %s101, %s103
      %p107 = scmp.eq.s32.totalorder %s25, 0
      %p108 = por %p106, %p107
      %p109 = scmp.ne.s32.totalorder %s101, %s103
      %p110 = scmp.eq.s32.totalorder %s30, 1
      %p111 = por %p109, %p110
      %p112 = scmp.ne.s32.totalorder %s103, %s104
      %p113 = scmp.eq.s32.totalorder %s30, 0
      %p114 = por %p112, %p113
      %p115 = scmp.ne.s32.totalorder %s103, %s104
      %p116 = scmp.eq.s32.totalorder %s31, 1
      %p117 = por %p115, %p116
      %p119 = scmp.ne.s32.totalorder %s104, %s118
      %p120 = scmp.eq.s32.totalorder %s31, 0
      %p121 = por %p119, %p120
      %s123 = sadd.s32 %s122, 1
      %p126 = scmp.eq.s32.totalorder %s25, 1
      %p127 = scmp.ne.s32.totalorder %s122, %s124
      %p128 = scmp.eq.s32.totalorder %s25, 0
      %p129 = por %p127, %p128
      %p130 = scmp.ne.s32.totalorder %s122, %s124
      %p131 = scmp.eq.s32.totalorder %s30, 1
      %p132 = por %p130, %p131
      %p133 = scmp.ne.s32.totalorder %s124, %s125
      %p134 = scmp.eq.s32.totalorder %s30, 0
      %p135 = por %p133, %p134
      %p136 = scmp.ne.s32.totalorder %s124, %s125
      %p137 = scmp.eq.s32.totalorder %s31, 1
      %p138 = por %p136, %p137
      %p140 = scmp.ne.s32.totalorder %s125, %s139
      %p141 = scmp.eq.s32.totalorder %s31, 0
      %p142 = por %p140, %p141
      %s144 = sadd.s32 %s143, 1
      %p147 = scmp.eq.s32.totalorder %s25, 1
      %p148 = scmp.ne.s32.totalorder %s143, %s145
      %p149 = scmp.eq.s32.totalorder %s25, 0
      %p150 = por %p148, %p149
      %p151 = scmp.ne.s32.totalorder %s143, %s145
      %p152 = scmp.eq.s32.totalorder %s30, 1
      %p153 = por %p151, %p152
      %p154 = scmp.ne.s32.totalorder %s145, %s146
      %p155 = scmp.eq.s32.totalorder %s30, 0
      %p156 = por %p154, %p155
      %p157 = scmp.ne.s32.totalorder %s145, %s146
      %p158 = scmp.eq.s32.totalorder %s31, 1
      %p159 = por %p157, %p158
      %p161 = scmp.ne.s32.totalorder %s146, %s160
      %p162 = scmp.eq.s32.totalorder %s31, 0
      %p163 = por %p161, %p162
      %s165 = sadd.s32 %s164, 1
      %p168 = scmp.eq.s32.totalorder %s25, 1
      %p169 = scmp.ne.s32.totalorder %s164, %s166
      %p170 = scmp.eq.s32.totalorder %s25, 0
      %p171 = por %p169, %p170
      %p172 = scmp.ne.s32.totalorder %s164, %s166
      %p173 = scmp.eq.s32.totalorder %s30, 1
      %p174 = por %p172, %p173
      %p175 = scmp.ne.s32.totalorder %s166, %s167
      %p176 = scmp.eq.s32.totalorder %s30, 0
      %p177 = por %p175, %p176
      %p178 = scmp.ne.s32.totalorder %s166, %s167
      %p179 = scmp.eq.s32.totalorder %s31, 1
      %p180 = por %p178, %p179
      %p182 = scmp.ne.s32.totalorder %s167, %s181
      %p183 = scmp.eq.s32.totalorder %s31, 0
      %p184 = por %p182, %p183
      %s186 = sadd.s32 %s185, 1
      %p189 = scmp.eq.s32.totalorder %s25, 1
      %p190 = scmp.ne.s32.totalorder %s185, %s187
      %p191 = scmp.eq.s32.totalorder %s25, 0
      %p192 = por %p190, %p191
      %p193 = scmp.ne.s32.totalorder %s185, %s187
      %p194 = scmp.eq.s32.totalorder %s30, 1
      %p195 = por %p193, %p194
      %p196 = scmp.ne.s32.totalorder %s187, %s188
      %p197 = scmp.eq.s32.totalorder %s30, 0
      %p198 = por %p196, %p197
      %p199 = scmp.ne.s32.totalorder %s187, %s188
      %p200 = scmp.eq.s32.totalorder %s31, 1
      %p201 = por %p199, %p200
      %p203 = scmp.ne.s32.totalorder %s188, %s202
      %p204 = scmp.eq.s32.totalorder %s31, 0
      %p205 = por %p203, %p204
      %s207 = sadd.s32 %s206, 1
      %p210 = scmp.eq.s32.totalorder %s25, 1
      %p211 = scmp.ne.s32.totalorder %s206, %s208
      %p212 = scmp.eq.s32.totalorder %s25, 0
      %p213 = por %p211, %p212
      %p214 = scmp.ne.s32.totalorder %s206, %s208
      %p215 = scmp.eq.s32.totalorder %s30, 1
      %p216 = por %p214, %p215
      %p217 = scmp.ne.s32.totalorder %s208, %s209
      %p218 = scmp.eq.s32.totalorder %s30, 0
      %p219 = por %p217, %p218
      %p220 = scmp.ne.s32.totalorder %s208, %s209
      %p221 = scmp.eq.s32.totalorder %s31, 1
      %p222 = por %p220, %p221
      %p224 = scmp.ne.s32.totalorder %s209, %s223
      %p225 = scmp.eq.s32.totalorder %s31, 0
      %p226 = por %p224, %p225
      %s228 = sadd.s32 %s227, 1
      %p231 = scmp.eq.s32.totalorder %s25, 1
      %p232 = scmp.ne.s32.totalorder %s227, %s229
      %p233 = scmp.eq.s32.totalorder %s25, 0
      %p234 = por %p232, %p233
      %p235 = scmp.ne.s32.totalorder %s227, %s229
      %p236 = scmp.eq.s32.totalorder %s30, 1
      %p237 = por %p235, %p236
      %p238 = scmp.ne.s32.totalorder %s229, %s230
      %p239 = scmp.eq.s32.totalorder %s30, 0
      %p240 = por %p238, %p239
      %p241 = scmp.ne.s32.totalorder %s229, %s230
      %p242 = scmp.eq.s32.totalorder %s31, 1
      %p243 = por %p241, %p242
      %p245 = scmp.ne.s32.totalorder %s230, %s244
      %p246 = scmp.eq.s32.totalorder %s31, 0
      %p247 = por %p245, %p246
      %s249 = sadd.s32 %s248, 1
      %p252 = scmp.eq.s32.totalorder %s25, 1
      %p253 = scmp.ne.s32.totalorder %s248, %s250
      %p254 = scmp.eq.s32.totalorder %s25, 0
      %p255 = por %p253, %p254
      %p256 = scmp.ne.s32.totalorder %s248, %s250
      %p257 = scmp.eq.s32.totalorder %s30, 1
      %p258 = por %p256, %p257
      %p259 = scmp.ne.s32.totalorder %s250, %s251
      %p260 = scmp.eq.s32.totalorder %s30, 0
      %p261 = por %p259, %p260
      %p262 = scmp.ne.s32.totalorder %s250, %s251
      %p263 = scmp.eq.s32.totalorder %s31, 1
      %p264 = por %p262, %p263
      %p266 = scmp.ne.s32.totalorder %s251, %s265
      %p267 = scmp.eq.s32.totalorder %s31, 0
      %p268 = por %p266, %p267
      %s270 = sadd.s32 %s269, 1
      %p273 = scmp.eq.s32.totalorder %s25, 1
      %p274 = scmp.ne.s32.totalorder %s269, %s271
      %p275 = scmp.eq.s32.totalorder %s25, 0
      %p276 = por %p274, %p275
      %p277 = scmp.ne.s32.totalorder %s269, %s271
      %p278 = scmp.eq.s32.totalorder %s30, 1
      %p279 = por %p277, %p278
      %p280 = scmp.ne.s32.totalorder %s271, %s272
      %p281 = scmp.eq.s32.totalorder %s30, 0
      %p282 = por %p280, %p281
      %p283 = scmp.ne.s32.totalorder %s271, %s272
      %p284 = scmp.eq.s32.totalorder %s31, 1
      %p285 = por %p283, %p284
      %p287 = scmp.ne.s32.totalorder %s272, %s286
      %p288 = scmp.eq.s32.totalorder %s31, 0
      %p289 = por %p287, %p288
      %s291 = sadd.s32 %s290, 1
      %p294 = scmp.eq.s32.totalorder %s25, 1
      %p295 = scmp.ne.s32.totalorder %s290, %s292
      %p296 = scmp.eq.s32.totalorder %s25, 0
      %p297 = por %p295, %p296
      %p298 = scmp.ne.s32.totalorder %s290, %s292
      %p299 = scmp.eq.s32.totalorder %s30, 1
      %p300 = por %p298, %p299
      %p301 = scmp.ne.s32.totalorder %s292, %s293
      %p302 = scmp.eq.s32.totalorder %s30, 0
      %p303 = por %p301, %p302
      %p304 = scmp.ne.s32.totalorder %s292, %s293
      %p305 = scmp.eq.s32.totalorder %s31, 1
      %p306 = por %p304, %p305
      %p308 = scmp.ne.s32.totalorder %s293, %s307
      %p309 = scmp.eq.s32.totalorder %s31, 0
      %p310 = por %p308, %p309
      %s311 = ssub.s32 %s25, %s32
      %p312 = scmp.eq.s32.totalorder %s311, 0
      %s314 = sadd.s32 %s313, 1
      %s315 = scalar_select %p312, %s313, %s314
      %p318 = pneg %p312
      %p319 = scmp.eq.s32.totalorder %s25, 1
      %p320 = por %p318, %p319
      %p321 = scmp.ne.s32.totalorder %s313, %s316
      %p322 = scmp.eq.s32.totalorder %s25, 0
      %p323 = por %p321, %p322
      %p324 = scmp.ne.s32.totalorder %s313, %s316
      %p325 = scmp.eq.s32.totalorder %s30, 1
      %p326 = por %p324, %p325
      %p327 = scmp.ne.s32.totalorder %s316, %s317
      %p328 = scmp.eq.s32.totalorder %s30, 0
      %p329 = por %p327, %p328
      %p330 = scmp.ne.s32.totalorder %s316, %s317
      %p331 = scmp.eq.s32.totalorder %s31, 1
      %p332 = por %p330, %p331
      %p334 = scmp.ne.s32.totalorder %s317, %s333
      %p335 = scmp.eq.s32.totalorder %s31, 0
      %p336 = por %p334, %p335
      %p337 = scmp.le.s32.totalorder 1, %s25
      %p338 = scmp.lt.s32.totalorder %s25, 3
      %p339 = pnand %p337, %p338
      %p340 = pneg %p339
      // Predicated region
      $region9: #{tpu_custom_call.1} parent=5 // pred_check
        _
      $region10: #{tpu_custom_call.1} parent=5 // pred_check_branch
        %342 = sbr.rel (%p339) target = $region12
      $region11: #{tpu_custom_call.1} parent=5 // pred_region
        %s343 = ssub.s32 %s25, 1
        // Predicated region
        $region13: #{tpu_custom_call.1} parent=11 // pred_check
          %p344 = pneg %p72
        $region14: #{tpu_custom_call.1} parent=11 // pred_check_branch
          %346 = sbr.rel (%p344) target = $region16
        $region15: #{tpu_custom_call.1} parent=11 // pred_region
          _
        $region16: #{tpu_custom_call.1} parent=11 // pred_fallthru
          _
        // Predicated region
        $region17: #{tpu_custom_call.1} parent=11 // pred_check
          %p347 = pneg %p93
        $region18: #{tpu_custom_call.1} parent=11 // pred_check_branch
          %349 = sbr.rel (%p347) target = $region20
        $region19: #{tpu_custom_call.1} parent=11 // pred_region
          _
        $region20: #{tpu_custom_call.1} parent=11 // pred_fallthru
          _
        // Predicated region
        $region21: #{tpu_custom_call.1} parent=11 // pred_check
          %p350 = pneg %p114
        $region22: #{tpu_custom_call.1} parent=11 // pred_check_branch
          %352 = sbr.rel (%p350) target = $region24
        $region23: #{tpu_custom_call.1} parent=11 // pred_region
          _
        $region24: #{tpu_custom_call.1} parent=11 // pred_fallthru
          _
        // Predicated region
        $region25: #{tpu_custom_call.1} parent=11 // pred_check
          %p353 = pneg %p135
        $region26: #{tpu_custom_call.1} parent=11 // pred_check_branch
          %355 = sbr.rel (%p353) target = $region28
        $region27: #{tpu_custom_call.1} parent=11 // pred_region
          _
        $region28: #{tpu_custom_call.1} parent=11 // pred_fallthru
          _
        // Predicated region
        $region29: #{tpu_custom_call.1} parent=11 // pred_check
          %p356 = pneg %p156
        $region30: #{tpu_custom_call.1} parent=11 // pred_check_branch
          %358 = sbr.rel (%p356) target = $region32
        $region31: #{tpu_custom_call.1} parent=11 // pred_region
          _
        $region32: #{tpu_custom_call.1} parent=11 // pred_fallthru
          _
        // Predicated region
        $region33: #{tpu_custom_call.1} parent=11 // pred_check
          %p359 = pneg %p177
        $region34: #{tpu_custom_call.1} parent=11 // pred_check_branch
          %361 = sbr.rel (%p359) target = $region36
        $region35: #{tpu_custom_call.1} parent=11 // pred_region
          _
        $region36: #{tpu_custom_call.1} parent=11 // pred_fallthru
          _
        // Predicated region
        $region37: #{tpu_custom_call.1} parent=11 // pred_check
          %p362 = pneg %p198
        $region38: #{tpu_custom_call.1} parent=11 // pred_check_branch
          %364 = sbr.rel (%p362) target = $region40
        $region39: #{tpu_custom_call.1} parent=11 // pred_region
          _
        $region40: #{tpu_custom_call.1} parent=11 // pred_fallthru
          _
        // Predicated region
        $region41: #{tpu_custom_call.1} parent=11 // pred_check
          %p365 = pneg %p219
        $region42: #{tpu_custom_call.1} parent=11 // pred_check_branch
          %367 = sbr.rel (%p365) target = $region44
        $region43: #{tpu_custom_call.1} parent=11 // pred_region
          _
        $region44: #{tpu_custom_call.1} parent=11 // pred_fallthru
          _
        // Predicated region
        $region45: #{tpu_custom_call.1} parent=11 // pred_check
          %p368 = pneg %p240
        $region46: #{tpu_custom_call.1} parent=11 // pred_check_branch
          %370 = sbr.rel (%p368) target = $region48
        $region47: #{tpu_custom_call.1} parent=11 // pred_region
          %s372 = ssub.s32 16384, 16384
          %373 = vsyncadd [#allocation4], %s372
          %s374 = sshll.u32 [#allocation3], 4
          %s375 = int_to_ptr.vmem [resolvable:$true] %s374
          %380 = dma.hbm_to_vmem [thread:$0]  %s9, 16384, %s375, [#allocation4], 256, 256, 16
        $region48: #{tpu_custom_call.1} parent=11 // pred_fallthru
          _
        // Predicated region
        $region49: #{tpu_custom_call.1} parent=11 // pred_check
          %p381 = pneg %p261
        $region50: #{tpu_custom_call.1} parent=11 // pred_check_branch
          %383 = sbr.rel (%p381) target = $region52
        $region51: #{tpu_custom_call.1} parent=11 // pred_region
          _
        $region52: #{tpu_custom_call.1} parent=11 // pred_fallthru
          _
        // Predicated region
        $region53: #{tpu_custom_call.1} parent=11 // pred_check
          %p384 = pneg %p282
        $region54: #{tpu_custom_call.1} parent=11 // pred_check_branch
          %386 = sbr.rel (%p384) target = $region56
        $region55: #{tpu_custom_call.1} parent=11 // pred_region
          _
        $region56: #{tpu_custom_call.1} parent=11 // pred_fallthru
          _
        // Predicated region
        $region57: #{tpu_custom_call.1} parent=11 // pred_check
          %p387 = pneg %p303
        $region58: #{tpu_custom_call.1} parent=11 // pred_check_branch
          %389 = sbr.rel (%p387) target = $region60
        $region59: #{tpu_custom_call.1} parent=11 // pred_region
          _
        $region60: #{tpu_custom_call.1} parent=11 // pred_fallthru
          _
      $region12: #{tpu_custom_call.1} parent=5 // pred_fallthru
        _
      %p390 = scmp.lt.s32.totalorder %s25, 2
      // Predicated region
      $region61: #{tpu_custom_call.1} parent=5 // pred_check
        %p391 = pneg %p390
      $region62: #{tpu_custom_call.1} parent=5 // pred_check_branch
        %393 = sbr.rel (%p391) target = $region64
      $region63: #{tpu_custom_call.1} parent=5 // pred_region
        // Predicated region
        $region65: #{tpu_custom_call.1} parent=63 // pred_check
          %p394 = pneg %p45
        $region66: #{tpu_custom_call.1} parent=63 // pred_check_branch
          %396 = sbr.rel (%p394) target = $region68
        $region67: #{tpu_custom_call.1} parent=63 // pred_region
          %p397 = scmp.lt.s32.totalorder %s25, 1
          %s398 = scalar_select %p397, %s25, 1
          %s399 = smul.addr %s398, 32
          %s400 = smul.addr %s399, 4
          %s401 = scalar_lea.vmem %s0, %s400
        $region68: #{tpu_custom_call.1} parent=63 // pred_fallthru
          _
      $region64: #{tpu_custom_call.1} parent=5 // pred_fallthru
        _
      %p402 = scmp.le.s32.totalorder 1, %s25
      %p403 = scmp.lt.s32.totalorder %s25, 3
      %p404 = pnand %p402, %p403
      %p405 = pneg %p404
      // Predicated region
      $region69: #{tpu_custom_call.1} parent=5 // pred_check
        _
      $region70: #{tpu_custom_call.1} parent=5 // pred_check_branch
        %407 = sbr.rel (%p404) target = $region72
      $region71: #{tpu_custom_call.1} parent=5 // pred_region
        %s408 = ssub.s32 %s25, 1
        // Predicated region
        $region73: #{tpu_custom_call.1} parent=71 // pred_check
          %p409 = pneg %p240
        $region74: #{tpu_custom_call.1} parent=71 // pred_check_branch
          %411 = sbr.rel (%p409) target = $region76
        $region75: #{tpu_custom_call.1} parent=71 // pred_region
          %412 = dma.done [#allocation4], 16384
        $region76: #{tpu_custom_call.1} parent=71 // pred_fallthru
          _
        %p413 = scmp.lt.s32.totalorder %s30, 1
        %s414 = scalar_select %p413, %s30, 1
        %s415 = smul.addr %s414, 32
        %s416 = smul.addr %s415, 4
        %s417 = scalar_lea.vmem %s0, %s416
        %p418 = pneg %p51
        %p419 = pneg %p48
        %p420 = pneg %p72
        %p421 = pneg %p69
        %p422 = pneg %p93
        %p423 = pneg %p90
        %p424 = pneg %p114
        %p425 = pneg %p111
        %p426 = pneg %p135
        %p427 = pneg %p132
        %p428 = pneg %p156
        %p429 = pneg %p153
        %p430 = pneg %p177
        %p431 = pneg %p174
        %p432 = pneg %p198
        %p433 = pneg %p195
        %p434 = pneg %p219
        %p435 = pneg %p216
        %p436 = pneg %p240
        %p437 = pneg %p237
        %p438 = pneg %p261
        %p439 = pneg %p258
        %p440 = pneg %p282
        %p441 = pneg %p279
        %p442 = pneg %p303
        %p443 = pneg %p300
        %p444 = pneg %p329
        %p445 = pneg %p326
        %s446 = sand.u32 %s316, 1
        %s447 = scalar_lea.sflag [#allocation5], %s446
        %s448 = sand.u32 %s316, 1
        %s449 = scalar_lea.vmem [#allocation6], %s448
        %p450 = scmp.lt.s32.totalorder %s30, 1
        %s451 = scalar_select %p450, %s30, 1
        %s452 = smul.addr %s451, 32
        %s453 = smul.addr %s452, 4
        %s454 = scalar_lea.vmem %s0, %s453
        %v456 = vld [vmem:[%s454] sm:$0xff]
        %v457 = vld [vmem:[%s454 + $0x8] sm:$0xff]
        %v458 = vld [vmem:[%s454 + $0x10] sm:$0xff]
        %v459 = vld [vmem:[%s454 + $0x18] sm:$0xff]
        %v460 = vld [vmem:[%s454 + $0x20] sm:$0xff]
        %v461 = vld [vmem:[%s454 + $0x28] sm:$0xff]
        %v462 = vld [vmem:[%s454 + $0x30] sm:$0xff]
        %v463 = vld [vmem:[%s454 + $0x38] sm:$0xff]
        %v464 = vld [vmem:[%s454 + $0x40] sm:$0xff]
        %v465 = vld [vmem:[%s454 + $0x48] sm:$0xff]
        %v466 = vld [vmem:[%s454 + $0x50] sm:$0xff]
        %v467 = vld [vmem:[%s454 + $0x58] sm:$0xff]
        %v468 = vld [vmem:[%s454 + $0x60] sm:$0xff]
        %v469 = vld [vmem:[%s454 + $0x68] sm:$0xff]
        %v470 = vld [vmem:[%s454 + $0x70] sm:$0xff]
        %v471 = vld [vmem:[%s454 + $0x78] sm:$0xff]
        %v472 = vld [vmem:[%s1] sm:$0xf]
        %v473 = vld [vmem:[%s1 + $0x4] sm:$0xf]
        %v474 = vld [vmem:[%s1 + $0x8] sm:$0xf]
        %v475 = vld [vmem:[%s1 + $0xc] sm:$0xf]
        %v476 = vld [vmem:[%s1 + $0x10] sm:$0xf]
        %v477 = vld [vmem:[%s1 + $0x14] sm:$0xf]
        %v478 = vld [vmem:[%s1 + $0x18] sm:$0xf]
        %v479 = vld [vmem:[%s1 + $0x1c] sm:$0xf]
        %v480 = vld [vmem:[%s1 + $0x20] sm:$0xf]
        %v481 = vld [vmem:[%s1 + $0x24] sm:$0xf]
        %v482 = vld [vmem:[%s1 + $0x28] sm:$0xf]
        %v483 = vld [vmem:[%s1 + $0x2c] sm:$0xf]
        %v484 = vld [vmem:[%s1 + $0x30] sm:$0xf]
        %v485 = vld [vmem:[%s1 + $0x34] sm:$0xf]
        %v486 = vld [vmem:[%s1 + $0x38] sm:$0xf]
        %v487 = vld [vmem:[%s1 + $0x3c] sm:$0xf]
        %v488 = vld [vmem:[%s1 + $0x40] sm:$0xf]
        %v489 = vld [vmem:[%s1 + $0x44] sm:$0xf]
        %v490 = vld [vmem:[%s1 + $0x48] sm:$0xf]
        %v491 = vld [vmem:[%s1 + $0x4c] sm:$0xf]
        %v492 = vld [vmem:[%s1 + $0x50] sm:$0xf]
        %v493 = vld [vmem:[%s1 + $0x54] sm:$0xf]
        %v494 = vld [vmem:[%s1 + $0x58] sm:$0xf]
        %v495 = vld [vmem:[%s1 + $0x5c] sm:$0xf]
        %v496 = vld [vmem:[%s1 + $0x60] sm:$0xf]
        %v497 = vld [vmem:[%s1 + $0x64] sm:$0xf]
        %v498 = vld [vmem:[%s1 + $0x68] sm:$0xf]
        %v499 = vld [vmem:[%s1 + $0x6c] sm:$0xf]
        %v500 = vld [vmem:[%s1 + $0x70] sm:$0xf]
        %v501 = vld [vmem:[%s1 + $0x74] sm:$0xf]
        %v502 = vld [vmem:[%s1 + $0x78] sm:$0xf]
        %v503 = vld [vmem:[%s1 + $0x7c] sm:$0xf]
        %v504 = vld [vmem:[%s1 + $0x80] sm:$0xf]
        %v505 = vld [vmem:[%s1 + $0x84] sm:$0xf]
        %v506 = vld [vmem:[%s1 + $0x88] sm:$0xf]
        %v507 = vld [vmem:[%s1 + $0x8c] sm:$0xf]
        %v508 = vld [vmem:[%s1 + $0x90] sm:$0xf]
        %v509 = vld [vmem:[%s1 + $0x94] sm:$0xf]
        %v510 = vld [vmem:[%s1 + $0x98] sm:$0xf]
        %v511 = vld [vmem:[%s1 + $0x9c] sm:$0xf]
        %v512 = vld [vmem:[%s1 + $0xa0] sm:$0xf]
        %v513 = vld [vmem:[%s1 + $0xa4] sm:$0xf]
        %v514 = vld [vmem:[%s1 + $0xa8] sm:$0xf]
        %v515 = vld [vmem:[%s1 + $0xac] sm:$0xf]
        %v516 = vld [vmem:[%s1 + $0xb0] sm:$0xf]
        %v517 = vld [vmem:[%s1 + $0xb4] sm:$0xf]
        %v518 = vld [vmem:[%s1 + $0xb8] sm:$0xf]
        %v519 = vld [vmem:[%s1 + $0xbc] sm:$0xf]
        %v520 = vld [vmem:[%s1 + $0xc0] sm:$0xf]
        %v521 = vld [vmem:[%s1 + $0xc4] sm:$0xf]
        %v522 = vld [vmem:[%s1 + $0xc8] sm:$0xf]
        %v523 = vld [vmem:[%s1 + $0xcc] sm:$0xf]
        %v524 = vld [vmem:[%s1 + $0xd0] sm:$0xf]
        %v525 = vld [vmem:[%s1 + $0xd4] sm:$0xf]
        %v526 = vld [vmem:[%s1 + $0xd8] sm:$0xf]
        %v527 = vld [vmem:[%s1 + $0xdc] sm:$0xf]
        %v528 = vld [vmem:[%s1 + $0xe0] sm:$0xf]
        %v529 = vld [vmem:[%s1 + $0xe4] sm:$0xf]
        %v530 = vld [vmem:[%s1 + $0xe8] sm:$0xf]
        %v531 = vld [vmem:[%s1 + $0xec] sm:$0xf]
        %v532 = vld [vmem:[%s1 + $0xf0] sm:$0xf]
        %v533 = vld [vmem:[%s1 + $0xf4] sm:$0xf]
        %v534 = vld [vmem:[%s1 + $0xf8] sm:$0xf]
        %v535 = vld [vmem:[%s1 + $0xfc] sm:$0xf]
        %v536 = vld [vmem:[%s2] sm:$0x1]
        %v538 = vlaneseq
        %v539 = vshrl.u32 %v538, 7
        %v540 = vsub.s32 0, %v539
        %v541 = vrot.slane %v536, %v540
        %v559 = vunpack.c.l.b16 %v456
        %v560 = vunpack.c.h.b16 %v456
        %v561 = vunpack.c.l.b16 %v457
        %v562 = vunpack.c.h.b16 %v457
        %v563 = vunpack.c.l.b16 %v458
        %v564 = vunpack.c.h.b16 %v458
        %v565 = vunpack.c.l.b16 %v459
        %v566 = vunpack.c.h.b16 %v459
        %v567 = vunpack.c.l.b16 %v460
        %v568 = vunpack.c.h.b16 %v460
        %v569 = vunpack.c.l.b16 %v461
        %v570 = vunpack.c.h.b16 %v461
        %v571 = vunpack.c.l.b16 %v462
        %v572 = vunpack.c.h.b16 %v462
        %v573 = vunpack.c.l.b16 %v463
        %v574 = vunpack.c.h.b16 %v463
        %v575 = vunpack.c.l.b16 %v464
        %v576 = vunpack.c.h.b16 %v464
        %v577 = vunpack.c.l.b16 %v465
        %v578 = vunpack.c.h.b16 %v465
        %v579 = vunpack.c.l.b16 %v466
        %v580 = vunpack.c.h.b16 %v466
        %v581 = vunpack.c.l.b16 %v467
        %v582 = vunpack.c.h.b16 %v467
        %v583 = vunpack.c.l.b16 %v468
        %v584 = vunpack.c.h.b16 %v468
        %v585 = vunpack.c.l.b16 %v469
        %v586 = vunpack.c.h.b16 %v469
        %v587 = vunpack.c.l.b16 %v470
        %v588 = vunpack.c.h.b16 %v470
        %v589 = vunpack.c.l.b16 %v471
        %v590 = vunpack.c.h.b16 %v471
        %v591 = vpack.c.b16 %v563, %v559
        %v592 = vpack.c.b16 %v564, %v560
        %v593 = vpack.c.b16 %v565, %v561
        %v594 = vpack.c.b16 %v566, %v562
        %v595 = vpack.c.b16 %v571, %v567
        %v596 = vpack.c.b16 %v572, %v568
        %v597 = vpack.c.b16 %v573, %v569
        %v598 = vpack.c.b16 %v574, %v570
        %v599 = vpack.c.b16 %v579, %v575
        %v600 = vpack.c.b16 %v580, %v576
        %v601 = vpack.c.b16 %v581, %v577
        %v602 = vpack.c.b16 %v582, %v578
        %v603 = vpack.c.b16 %v587, %v583
        %v604 = vpack.c.b16 %v588, %v584
        %v605 = vpack.c.b16 %v589, %v585
        %v606 = vpack.c.b16 %v590, %v586
        %v687 = vunpack.c.l.b16 %v472
        %v688 = vunpack.c.l.b16 %v473
        %v689 = vunpack.c.l.b16 %v474
        %v690 = vunpack.c.l.b16 %v475
        %v691 = vunpack.c.l.b16 %v476
        %v692 = vunpack.c.l.b16 %v477
        %v693 = vunpack.c.l.b16 %v478
        %v694 = vunpack.c.l.b16 %v479
        %v695 = vunpack.c.l.b16 %v480
        %v696 = vunpack.c.l.b16 %v481
        %v697 = vunpack.c.l.b16 %v482
        %v698 = vunpack.c.l.b16 %v483
        %v699 = vunpack.c.l.b16 %v484
        %v700 = vunpack.c.l.b16 %v485
        %v701 = vunpack.c.l.b16 %v486
        %v702 = vunpack.c.l.b16 %v487
        %v703 = vunpack.c.l.b16 %v488
        %v704 = vunpack.c.l.b16 %v489
        %v705 = vunpack.c.l.b16 %v490
        %v706 = vunpack.c.l.b16 %v491
        %v707 = vunpack.c.l.b16 %v492
        %v708 = vunpack.c.l.b16 %v493
        %v709 = vunpack.c.l.b16 %v494
        %v710 = vunpack.c.l.b16 %v495
        %v711 = vunpack.c.l.b16 %v496
        %v712 = vunpack.c.l.b16 %v497
        %v713 = vunpack.c.l.b16 %v498
        %v714 = vunpack.c.l.b16 %v499
        %v715 = vunpack.c.l.b16 %v500
        %v716 = vunpack.c.l.b16 %v501
        %v717 = vunpack.c.l.b16 %v502
        %v718 = vunpack.c.l.b16 %v503
        %v719 = vunpack.c.l.b16 %v504
        %v720 = vunpack.c.l.b16 %v505
        %v721 = vunpack.c.l.b16 %v506
        %v722 = vunpack.c.l.b16 %v507
        %v723 = vunpack.c.l.b16 %v508
        %v724 = vunpack.c.l.b16 %v509
        %v725 = vunpack.c.l.b16 %v510
        %v726 = vunpack.c.l.b16 %v511
        %v727 = vunpack.c.l.b16 %v512
        %v728 = vunpack.c.l.b16 %v513
        %v729 = vunpack.c.l.b16 %v514
        %v730 = vunpack.c.l.b16 %v515
        %v731 = vunpack.c.l.b16 %v516
        %v732 = vunpack.c.l.b16 %v517
        %v733 = vunpack.c.l.b16 %v518
        %v734 = vunpack.c.l.b16 %v519
        %v735 = vunpack.c.l.b16 %v520
        %v736 = vunpack.c.l.b16 %v521
        %v737 = vunpack.c.l.b16 %v522
        %v738 = vunpack.c.l.b16 %v523
        %v739 = vunpack.c.l.b16 %v524
        %v740 = vunpack.c.l.b16 %v525
        %v741 = vunpack.c.l.b16 %v526
        %v742 = vunpack.c.l.b16 %v527
        %v743 = vunpack.c.l.b16 %v528
        %v744 = vunpack.c.l.b16 %v529
        %v745 = vunpack.c.l.b16 %v530
        %v746 = vunpack.c.l.b16 %v531
        %v747 = vunpack.c.l.b16 %v532
        %v748 = vunpack.c.l.b16 %v533
        %v749 = vunpack.c.l.b16 %v534
        %v750 = vunpack.c.l.b16 %v535
        %v751 = vpack.c.b16 %v688, %v687
        %v752 = vpack.c.b16 %v690, %v689
        %v753 = vpack.c.b16 %v692, %v691
        %v754 = vpack.c.b16 %v694, %v693
        %v755 = vpack.c.b16 %v696, %v695
        %v756 = vpack.c.b16 %v698, %v697
        %v757 = vpack.c.b16 %v700, %v699
        %v758 = vpack.c.b16 %v702, %v701
        %v759 = vpack.c.b16 %v704, %v703
        %v760 = vpack.c.b16 %v706, %v705
        %v761 = vpack.c.b16 %v708, %v707
        %v762 = vpack.c.b16 %v710, %v709
        %v763 = vpack.c.b16 %v712, %v711
        %v764 = vpack.c.b16 %v714, %v713
        %v765 = vpack.c.b16 %v716, %v715
        %v766 = vpack.c.b16 %v718, %v717
        %v767 = vpack.c.b16 %v720, %v719
        %v768 = vpack.c.b16 %v722, %v721
        %v769 = vpack.c.b16 %v724, %v723
        %v770 = vpack.c.b16 %v726, %v725
        %v771 = vpack.c.b16 %v728, %v727
        %v772 = vpack.c.b16 %v730, %v729
        %v773 = vpack.c.b16 %v732, %v731
        %v774 = vpack.c.b16 %v734, %v733
        %v775 = vpack.c.b16 %v736, %v735
        %v776 = vpack.c.b16 %v738, %v737
        %v777 = vpack.c.b16 %v740, %v739
        %v778 = vpack.c.b16 %v742, %v741
        %v779 = vpack.c.b16 %v744, %v743
        %v780 = vpack.c.b16 %v746, %v745
        %v781 = vpack.c.b16 %v748, %v747
        %v782 = vpack.c.b16 %v750, %v749
        %815 = vmatprep.subr.bf16.mxu0 0
        %816 = vmatpush1.bf16.msra.mxu0 %v758
        %817 = vmatprep.subr.bf16.mxu0 0
        %818 = vmatpush1.bf16.msra.mxu0 %v757
        %819 = vmatprep.subr.bf16.mxu0 0
        %820 = vmatpush1.bf16.msra.mxu0 %v756
        %821 = vmatprep.subr.bf16.mxu0 0
        %822 = vmatpush1.bf16.msra.mxu0 %v755
        %823 = vmatprep.subr.bf16.mxu0 0
        %824 = vmatpush1.bf16.msra.mxu0 %v754
        %825 = vmatprep.subr.bf16.mxu0 0
        %826 = vmatpush1.bf16.msra.mxu0 %v753
        %827 = vmatprep.subr.bf16.mxu0 0
        %828 = vmatpush1.bf16.msra.mxu0 %v752
        %829 = vmatprep.subr.bf16.mxu0 0
        %830 = vmatpush1.bf16.msra.mxu0 %v751
        %831 = vmatprep.subr.bf16.mxu0 0
        %832 = vmatpush2.bf16.msra.mxu0 %v766
        %833 = vmatprep.subr.bf16.mxu0 0
        %834 = vmatpush2.bf16.msra.mxu0 %v765
        %835 = vmatprep.subr.bf16.mxu0 0
        %836 = vmatpush2.bf16.msra.mxu0 %v764
        %837 = vmatprep.subr.bf16.mxu0 0
        %838 = vmatpush2.bf16.msra.mxu0 %v763
        %839 = vmatprep.subr.bf16.mxu0 0
        %840 = vmatpush2.bf16.msra.mxu0 %v762
        %841 = vmatprep.subr.bf16.mxu0 0
        %842 = vmatpush2.bf16.msra.mxu0 %v761
        %843 = vmatprep.subr.bf16.mxu0 0
        %844 = vmatpush2.bf16.msra.mxu0 %v760
        %845 = vmatprep.subr.bf16.mxu0 0
        %846 = vmatpush2.bf16.msra.mxu0 %v759
        %847 = vmatprep.mubr.bf16.mxu0 %v592
        %848 = vmatmul.mubr.bf16.gmra.mxu0 %v591
        %v849 = vpop.f32.mrf.mxu0
        %v850 = vadd.f32 %v541, %v849
        %v851 = vpop.f32.mrf.mxu0
        %v852 = vpop.f32.mrf.mxu0
        %v853 = vadd.f32 %v541, %v852
        %v854 = vpop.f32.mrf.mxu0
        %855 = vmatprep.mubr.bf16.mxu0 %v596
        %856 = vmatmul.mubr.bf16.gmra.mxu0 %v595
        %v857 = vpop.f32.mrf.mxu0
        %v858 = vadd.f32 %v541, %v857
        %v859 = vpop.f32.mrf.mxu0
        %v860 = vpop.f32.mrf.mxu0
        %v861 = vadd.f32 %v541, %v860
        %v862 = vpop.f32.mrf.mxu0
        %863 = vmatprep.mubr.bf16.mxu0 %v600
        %864 = vmatmul.mubr.bf16.gmra.mxu0 %v599
        %v865 = vpop.f32.mrf.mxu0
        %v866 = vadd.f32 %v541, %v865
        %v867 = vpop.f32.mrf.mxu0
        %v868 = vpop.f32.mrf.mxu0
        %v869 = vadd.f32 %v541, %v868
        %v870 = vpop.f32.mrf.mxu0
        %871 = vmatprep.mubr.bf16.mxu0 %v604
        %872 = vmatmul.mubr.bf16.gmra.mxu0 %v603
        %v873 = vpop.f32.mrf.mxu0
        %v874 = vadd.f32 %v541, %v873
        %v875 = vpop.f32.mrf.mxu0
        %v876 = vpop.f32.mrf.mxu0
        %v877 = vadd.f32 %v541, %v876
        %v878 = vpop.f32.mrf.mxu0
        %879 = vdwg.mxu0
        %880 = vmatprep.subr.bf16.mxu0 0
        %881 = vmatpush1.bf16.msra.mxu0 %v774
        %882 = vmatprep.subr.bf16.mxu0 0
        %883 = vmatpush1.bf16.msra.mxu0 %v773
        %884 = vmatprep.subr.bf16.mxu0 0
        %885 = vmatpush1.bf16.msra.mxu0 %v772
        %886 = vmatprep.subr.bf16.mxu0 0
        %887 = vmatpush1.bf16.msra.mxu0 %v771
        %888 = vmatprep.subr.bf16.mxu0 0
        %889 = vmatpush1.bf16.msra.mxu0 %v770
        %890 = vmatprep.subr.bf16.mxu0 0
        %891 = vmatpush1.bf16.msra.mxu0 %v769
        %892 = vmatprep.subr.bf16.mxu0 0
        %893 = vmatpush1.bf16.msra.mxu0 %v768
        %894 = vmatprep.subr.bf16.mxu0 0
        %895 = vmatpush1.bf16.msra.mxu0 %v767
        %896 = vmatprep.subr.bf16.mxu0 0
        %897 = vmatpush2.bf16.msra.mxu0 %v782
        %898 = vmatprep.subr.bf16.mxu0 0
        %899 = vmatpush2.bf16.msra.mxu0 %v781
        %900 = vmatprep.subr.bf16.mxu0 0
        %901 = vmatpush2.bf16.msra.mxu0 %v780
        %902 = vmatprep.subr.bf16.mxu0 0
        %903 = vmatpush2.bf16.msra.mxu0 %v779
        %904 = vmatprep.subr.bf16.mxu0 0
        %905 = vmatpush2.bf16.msra.mxu0 %v778
        %906 = vmatprep.subr.bf16.mxu0 0
        %907 = vmatpush2.bf16.msra.mxu0 %v777
        %908 = vmatprep.subr.bf16.mxu0 0
        %909 = vmatpush2.bf16.msra.mxu0 %v776
        %910 = vmatprep.subr.bf16.mxu0 0
        %911 = vmatpush2.bf16.msra.mxu0 %v775
        %912 = vmatprep.mubr.bf16.mxu0 %v594
        %913 = vmatmul.mubr.bf16.gmra.mxu0 %v593
        %v914 = vpop.f32.mrf.mxu0
        %v915 = vadd.f32 %v850, %v914
        %v916 = vpop.f32.mrf.mxu0
        %v917 = vpop.f32.mrf.mxu0
        %v918 = vadd.f32 %v853, %v917
        %v919 = vpop.f32.mrf.mxu0
        %920 = vmatprep.mubr.bf16.mxu0 %v598
        %921 = vmatmul.mubr.bf16.gmra.mxu0 %v597
        %v922 = vpop.f32.mrf.mxu0
        %v923 = vadd.f32 %v858, %v922
        %v924 = vpop.f32.mrf.mxu0
        %v925 = vpop.f32.mrf.mxu0
        %v926 = vadd.f32 %v861, %v925
        %v927 = vpop.f32.mrf.mxu0
        %928 = vmatprep.mubr.bf16.mxu0 %v602
        %929 = vmatmul.mubr.bf16.gmra.mxu0 %v601
        %v930 = vpop.f32.mrf.mxu0
        %v931 = vadd.f32 %v866, %v930
        %v932 = vpop.f32.mrf.mxu0
        %v933 = vpop.f32.mrf.mxu0
        %v934 = vadd.f32 %v869, %v933
        %v935 = vpop.f32.mrf.mxu0
        %936 = vmatprep.mubr.bf16.mxu0 %v606
        %937 = vmatmul.mubr.bf16.gmra.mxu0 %v605
        %v938 = vpop.f32.mrf.mxu0
        %v939 = vadd.f32 %v874, %v938
        %v940 = vpop.f32.mrf.mxu0
        %v941 = vpop.f32.mrf.mxu0
        %v942 = vadd.f32 %v877, %v941
        %v943 = vpop.f32.mrf.mxu0
        %944 = vdwg.mxu0
        %v945 = vmax.f32 %v915, 0.0
        %v946 = vmax.f32 %v918, 0.0
        %v947 = vmax.f32 %v923, 0.0
        %v948 = vmax.f32 %v926, 0.0
        %v949 = vmax.f32 %v931, 0.0
        %v950 = vmax.f32 %v934, 0.0
        %v951 = vmax.f32 %v939, 0.0
        %v952 = vmax.f32 %v942, 0.0
        %v953 = vld [vmem:[%s3] sm:$0xff]
        %v954 = vld [vmem:[%s3 + $0x8] sm:$0xff]
        %v955 = vld [vmem:[%s3 + $0x10] sm:$0xff]
        %v956 = vld [vmem:[%s3 + $0x18] sm:$0xff]
        %v957 = vld [vmem:[%s3 + $0x20] sm:$0xff]
        %v958 = vld [vmem:[%s3 + $0x28] sm:$0xff]
        %v959 = vld [vmem:[%s3 + $0x30] sm:$0xff]
        %v960 = vld [vmem:[%s3 + $0x38] sm:$0xff]
        %v961 = vld [vmem:[%s4] sm:$0x1]
        %v963 = vlaneseq
        %v964 = vshrl.u32 %v963, 7
        %v965 = vsub.s32 0, %v964
        %v966 = vrot.slane %v961, %v965
        %vm968 = vcmask 523264
        %v970 = vsel %vm968, %v945, 0
        %v973 = vsel %vm968, %v946, 0
        %v976 = vsel %vm968, %v947, 0
        %v979 = vsel %vm968, %v948, 0
        %v982 = vsel %vm968, %v949, 0
        %v985 = vsel %vm968, %v950, 0
        %v988 = vsel %vm968, %v951, 0
        %v991 = vsel %vm968, %v952, 0
        %993 = vmatprep.subr.mxu0 0.0
        %994 = vmatpush1.msra.mxu0 0.0
        %995 = vmatprep.subr.mxu0 0.0
        %996 = vmatpush1.msra.mxu0 0.0
        %997 = vmatprep.subr.mxu0 0.0
        %998 = vmatpush1.msra.mxu0 0.0
        %999 = vmatprep.subr.mxu0 0.0
        %1000 = vmatpush1.msra.mxu0 0.0
        %1001 = vmatprep.subr.mxu0 0.0
        %1002 = vmatpush1.msra.mxu0 0.0
        %1003 = vmatprep.subr.mxu0 0.0
        %1004 = vmatpush1.msra.mxu0 0.0
        %1005 = vmatprep.subr.mxu0 0.0
        %1006 = vmatpush1.msra.mxu0 0.0
        %1007 = vmatprep.subr.mxu0 0.0
        %1008 = vmatpush1.msra.mxu0 0.0
        %1009 = vmatprep.subr.mxu0 0.0
        %1010 = vmatpush1.msra.mxu0 %v960
        %1011 = vmatprep.subr.mxu0 0.0
        %1012 = vmatpush1.msra.mxu0 %v959
        %1013 = vmatprep.subr.mxu0 0.0
        %1014 = vmatpush1.msra.mxu0 %v958
        %1015 = vmatprep.subr.mxu0 0.0
        %1016 = vmatpush1.msra.mxu0 %v957
        %1017 = vmatprep.subr.mxu0 0.0
        %1018 = vmatpush1.msra.mxu0 %v956
        %1019 = vmatprep.subr.mxu0 0.0
        %1020 = vmatpush1.msra.mxu0 %v955
        %1021 = vmatprep.subr.mxu0 0.0
        %1022 = vmatpush1.msra.mxu0 %v954
        %1023 = vmatprep.subr.mxu0 0.0
        %1024 = vmatpush1.msra.mxu0 %v953
        %1025 = vmatprep.subr.mxu0 0.0
        %1026 = vmatpush2.msra.mxu0 0.0
        %1027 = vmatprep.subr.mxu0 0.0
        %1028 = vmatpush2.msra.mxu0 0.0
        %1029 = vmatprep.subr.mxu0 0.0
        %1030 = vmatpush2.msra.mxu0 0.0
        %1031 = vmatprep.subr.mxu0 0.0
        %1032 = vmatpush2.msra.mxu0 0.0
        %1033 = vmatprep.subr.mxu0 0.0
        %1034 = vmatpush2.msra.mxu0 0.0
        %1035 = vmatprep.subr.mxu0 0.0
        %1036 = vmatpush2.msra.mxu0 0.0
        %1037 = vmatprep.subr.mxu0 0.0
        %1038 = vmatpush2.msra.mxu0 0.0
        %1039 = vmatprep.subr.mxu0 0.0
        %1040 = vmatpush2.msra.mxu0 0.0
        %1041 = vmatprep.subr.mxu0 0.0
        %1042 = vmatpush2.msra.mxu0 0.0
        %1043 = vmatprep.subr.mxu0 0.0
        %1044 = vmatpush2.msra.mxu0 0.0
        %1045 = vmatprep.subr.mxu0 0.0
        %1046 = vmatpush2.msra.mxu0 0.0
        %1047 = vmatprep.subr.mxu0 0.0
        %1048 = vmatpush2.msra.mxu0 0.0
        %1049 = vmatprep.subr.mxu0 0.0
        %1050 = vmatpush2.msra.mxu0 0.0
        %1051 = vmatprep.subr.mxu0 0.0
        %1052 = vmatpush2.msra.mxu0 0.0
        %1053 = vmatprep.subr.mxu0 0.0
        %1054 = vmatpush2.msra.mxu0 0.0
        %1055 = vmatprep.subr.mxu0 0.0
        %1056 = vmatpush2.msra.mxu0 0.0
        %1057 = vmatprep.mubr.f32.mxu0 0.0
        %1058 = vmatmul.mubr.f32.gmra.mxu0 %v970
        %v1059 = vpop.f32.mrf.mxu0
        %v1060 = vadd.f32 %v966, %v1059
        %v1061 = vpop.f32.mrf.mxu0
        %1062 = vmatprep.mubr.f32.mxu0 0.0
        %1063 = vmatmul.mubr.f32.gmra.mxu0 %v973
        %v1064 = vpop.f32.mrf.mxu0
        %v1065 = vadd.f32 %v966, %v1064
        %v1066 = vpop.f32.mrf.mxu0
        %1067 = vmatprep.mubr.f32.mxu0 0.0
        %1068 = vmatmul.mubr.f32.gmra.mxu0 %v976
        %v1069 = vpop.f32.mrf.mxu0
        %v1070 = vadd.f32 %v966, %v1069
        %v1071 = vpop.f32.mrf.mxu0
        %1072 = vmatprep.mubr.f32.mxu0 0.0
        %1073 = vmatmul.mubr.f32.gmra.mxu0 %v979
        %v1074 = vpop.f32.mrf.mxu0
        %v1075 = vadd.f32 %v966, %v1074
        %v1076 = vpop.f32.mrf.mxu0
        %1077 = vmatprep.mubr.f32.mxu0 0.0
        %1078 = vmatmul.mubr.f32.gmra.mxu0 %v982
        %v1079 = vpop.f32.mrf.mxu0
        %v1080 = vadd.f32 %v966, %v1079
        %v1081 = vpop.f32.mrf.mxu0
        %1082 = vmatprep.mubr.f32.mxu0 0.0
        %1083 = vmatmul.mubr.f32.gmra.mxu0 %v985
        %v1084 = vpop.f32.mrf.mxu0
        %v1085 = vadd.f32 %v966, %v1084
        %v1086 = vpop.f32.mrf.mxu0
        %1087 = vmatprep.mubr.f32.mxu0 0.0
        %1088 = vmatmul.mubr.f32.gmra.mxu0 %v988
        %v1089 = vpop.f32.mrf.mxu0
        %v1090 = vadd.f32 %v966, %v1089
        %v1091 = vpop.f32.mrf.mxu0
        %1092 = vmatprep.mubr.f32.mxu0 0.0
        %1093 = vmatmul.mubr.f32.gmra.mxu0 %v991
        %v1094 = vpop.f32.mrf.mxu0
        %v1095 = vadd.f32 %v966, %v1094
        %v1096 = vpop.f32.mrf.mxu0
        %1097 = vdwg.mxu0
        %v1098 = vmax.f32 %v1060, 0.0
        %v1099 = vmax.f32 %v1065, 0.0
        %v1100 = vmax.f32 %v1070, 0.0
        %v1101 = vmax.f32 %v1075, 0.0
        %v1102 = vmax.f32 %v1080, 0.0
        %v1103 = vmax.f32 %v1085, 0.0
        %v1104 = vmax.f32 %v1090, 0.0
        %v1105 = vmax.f32 %v1095, 0.0
        %v1106 = vld [vmem:[%s5] sm:$0xff]
        %v1107 = vld [vmem:[%s5 + $0x8] sm:$0xff]
        %v1108 = vld [vmem:[%s6] sm:$0x1]
        %v1110 = vlaneseq
        %v1111 = vshrl.u32 %v1110, 7
        %v1112 = vsub.s32 0, %v1111
        %v1113 = vrot.slane %v1108, %v1112
        %vm1115 = vcmask 130048
        %v1117 = vsel %vm1115, %v1098, 0
        %v1120 = vsel %vm1115, %v1099, 0
        %v1123 = vsel %vm1115, %v1100, 0
        %v1126 = vsel %vm1115, %v1101, 0
        %v1129 = vsel %vm1115, %v1102, 0
        %v1132 = vsel %vm1115, %v1103, 0
        %v1135 = vsel %vm1115, %v1104, 0
        %v1138 = vsel %vm1115, %v1105, 0
        %1140 = vmatprep.subr.mxu0 0.0
        %1141 = vmatpush1.msra.mxu0 0.0
        %1142 = vmatprep.subr.mxu0 0.0
        %1143 = vmatpush1.msra.mxu0 0.0
        %1144 = vmatprep.subr.mxu0 0.0
        %1145 = vmatpush1.msra.mxu0 0.0
        %1146 = vmatprep.subr.mxu0 0.0
        %1147 = vmatpush1.msra.mxu0 0.0
        %1148 = vmatprep.subr.mxu0 0.0
        %1149 = vmatpush1.msra.mxu0 0.0
        %1150 = vmatprep.subr.mxu0 0.0
        %1151 = vmatpush1.msra.mxu0 0.0
        %1152 = vmatprep.subr.mxu0 0.0
        %1153 = vmatpush1.msra.mxu0 0.0
        %1154 = vmatprep.subr.mxu0 0.0
        %1155 = vmatpush1.msra.mxu0 0.0
        %1156 = vmatprep.subr.mxu0 0.0
        %1157 = vmatpush1.msra.mxu0 0.0
        %1158 = vmatprep.subr.mxu0 0.0
        %1159 = vmatpush1.msra.mxu0 0.0
        %1160 = vmatprep.subr.mxu0 0.0
        %1161 = vmatpush1.msra.mxu0 0.0
        %1162 = vmatprep.subr.mxu0 0.0
        %1163 = vmatpush1.msra.mxu0 0.0
        %1164 = vmatprep.subr.mxu0 0.0
        %1165 = vmatpush1.msra.mxu0 0.0
        %1166 = vmatprep.subr.mxu0 0.0
        %1167 = vmatpush1.msra.mxu0 0.0
        %1168 = vmatprep.subr.mxu0 0.0
        %1169 = vmatpush1.msra.mxu0 %v1107
        %1170 = vmatprep.subr.mxu0 0.0
        %1171 = vmatpush1.msra.mxu0 %v1106
        %1172 = vmatprep.subr.mxu0 0.0
        %1173 = vmatpush2.msra.mxu0 0.0
        %1174 = vmatprep.subr.mxu0 0.0
        %1175 = vmatpush2.msra.mxu0 0.0
        %1176 = vmatprep.subr.mxu0 0.0
        %1177 = vmatpush2.msra.mxu0 0.0
        %1178 = vmatprep.subr.mxu0 0.0
        %1179 = vmatpush2.msra.mxu0 0.0
        %1180 = vmatprep.subr.mxu0 0.0
        %1181 = vmatpush2.msra.mxu0 0.0
        %1182 = vmatprep.subr.mxu0 0.0
        %1183 = vmatpush2.msra.mxu0 0.0
        %1184 = vmatprep.subr.mxu0 0.0
        %1185 = vmatpush2.msra.mxu0 0.0
        %1186 = vmatprep.subr.mxu0 0.0
        %1187 = vmatpush2.msra.mxu0 0.0
        %1188 = vmatprep.subr.mxu0 0.0
        %1189 = vmatpush2.msra.mxu0 0.0
        %1190 = vmatprep.subr.mxu0 0.0
        %1191 = vmatpush2.msra.mxu0 0.0
        %1192 = vmatprep.subr.mxu0 0.0
        %1193 = vmatpush2.msra.mxu0 0.0
        %1194 = vmatprep.subr.mxu0 0.0
        %1195 = vmatpush2.msra.mxu0 0.0
        %1196 = vmatprep.subr.mxu0 0.0
        %1197 = vmatpush2.msra.mxu0 0.0
        %1198 = vmatprep.subr.mxu0 0.0
        %1199 = vmatpush2.msra.mxu0 0.0
        %1200 = vmatprep.subr.mxu0 0.0
        %1201 = vmatpush2.msra.mxu0 0.0
        %1202 = vmatprep.subr.mxu0 0.0
        %1203 = vmatpush2.msra.mxu0 0.0
        %1204 = vmatprep.mubr.f32.mxu0 0.0
        %1205 = vmatmul.mubr.f32.gmra.mxu0 %v1117
        %v1206 = vpop.f32.mrf.mxu0
        %v1207 = vadd.f32 %v1113, %v1206
        %v1208 = vpop.f32.mrf.mxu0
        %1209 = vmatprep.mubr.f32.mxu0 0.0
        %1210 = vmatmul.mubr.f32.gmra.mxu0 %v1120
        %v1211 = vpop.f32.mrf.mxu0
        %v1212 = vadd.f32 %v1113, %v1211
        %v1213 = vpop.f32.mrf.mxu0
        %1214 = vmatprep.mubr.f32.mxu0 0.0
        %1215 = vmatmul.mubr.f32.gmra.mxu0 %v1123
        %v1216 = vpop.f32.mrf.mxu0
        %v1217 = vadd.f32 %v1113, %v1216
        %v1218 = vpop.f32.mrf.mxu0
        %1219 = vmatprep.mubr.f32.mxu0 0.0
        %1220 = vmatmul.mubr.f32.gmra.mxu0 %v1126
        %v1221 = vpop.f32.mrf.mxu0
        %v1222 = vadd.f32 %v1113, %v1221
        %v1223 = vpop.f32.mrf.mxu0
        %1224 = vmatprep.mubr.f32.mxu0 0.0
        %1225 = vmatmul.mubr.f32.gmra.mxu0 %v1129
        %v1226 = vpop.f32.mrf.mxu0
        %v1227 = vadd.f32 %v1113, %v1226
        %v1228 = vpop.f32.mrf.mxu0
        %1229 = vmatprep.mubr.f32.mxu0 0.0
        %1230 = vmatmul.mubr.f32.gmra.mxu0 %v1132
        %v1231 = vpop.f32.mrf.mxu0
        %v1232 = vadd.f32 %v1113, %v1231
        %v1233 = vpop.f32.mrf.mxu0
        %1234 = vmatprep.mubr.f32.mxu0 0.0
        %1235 = vmatmul.mubr.f32.gmra.mxu0 %v1135
        %v1236 = vpop.f32.mrf.mxu0
        %v1237 = vadd.f32 %v1113, %v1236
        %v1238 = vpop.f32.mrf.mxu0
        %1239 = vmatprep.mubr.f32.mxu0 0.0
        %1240 = vmatmul.mubr.f32.gmra.mxu0 %v1138
        %v1241 = vpop.f32.mrf.mxu0
        %v1242 = vadd.f32 %v1113, %v1241
        %v1243 = vpop.f32.mrf.mxu0
        %1244 = vdwg.mxu0
        %v1245 = vmax.f32 %v1207, 0.0
        %v1246 = vmax.f32 %v1212, 0.0
        %v1247 = vmax.f32 %v1217, 0.0
        %v1248 = vmax.f32 %v1222, 0.0
        %v1249 = vmax.f32 %v1227, 0.0
        %v1250 = vmax.f32 %v1232, 0.0
        %v1251 = vmax.f32 %v1237, 0.0
        %v1252 = vmax.f32 %v1242, 0.0
        %v1253 = vld [vmem:[%s7] sm:$0x1]
        %v1255 = vlaneseq
        %v1256 = vshrl.u32 %v1255, 7
        %v1257 = vsub.s32 0, %v1256
        %v1258 = vrot.slane %v1253, %v1257
        %v1260 = vmul.f32 %v1245, %v1258
        %v1261 = vmul.f32 %v1246, %v1258
        %v1262 = vmul.f32 %v1247, %v1258
        %v1263 = vmul.f32 %v1248, %v1258
        %v1264 = vmul.f32 %v1249, %v1258
        %v1265 = vmul.f32 %v1250, %v1258
        %v1266 = vmul.f32 %v1251, %v1258
        %v1267 = vmul.f32 %v1252, %v1258
        %vm1268 = vcmask 64512
        %v1269 = vsel %vm1268, %v1260, 0.0
        %1270 = vadd.xlane.f32.xlu0 %v1269
        %v1271 = vpop.xlane.xlu0 %1270
        %v1272 = vsel %vm1268, %v1261, 0.0
        %1273 = vadd.xlane.f32.xlu0 %v1272
        %v1274 = vpop.xlane.xlu0 %1273
        %v1275 = vsel %vm1268, %v1262, 0.0
        %1276 = vadd.xlane.f32.xlu0 %v1275
        %v1277 = vpop.xlane.xlu0 %1276
        %v1278 = vsel %vm1268, %v1263, 0.0
        %1279 = vadd.xlane.f32.xlu0 %v1278
        %v1280 = vpop.xlane.xlu0 %1279
        %v1281 = vsel %vm1268, %v1264, 0.0
        %1282 = vadd.xlane.f32.xlu0 %v1281
        %v1283 = vpop.xlane.xlu0 %1282
        %v1284 = vsel %vm1268, %v1265, 0.0
        %1285 = vadd.xlane.f32.xlu0 %v1284
        %v1286 = vpop.xlane.xlu0 %1285
        %v1287 = vsel %vm1268, %v1266, 0.0
        %1288 = vadd.xlane.f32.xlu0 %v1287
        %v1289 = vpop.xlane.xlu0 %1288
        %v1290 = vsel %vm1268, %v1267, 0.0
        %1291 = vadd.xlane.f32.xlu0 %v1290
        %v1292 = vpop.xlane.xlu0 %1291
        %v1293 = vld [vmem:[#allocation2] sm:$0x1]
        %v1295 = vlaneseq
        %v1296 = vshrl.u32 %v1295, 7
        %v1297 = vsub.s32 0, %v1296
        %v1298 = vrot.slane %v1293, %v1297
        %v1300 = vadd.f32 %v1271, %v1298
        %v1301 = vadd.f32 %v1274, %v1298
        %v1302 = vadd.f32 %v1277, %v1298
        %v1303 = vadd.f32 %v1280, %v1298
        %v1304 = vadd.f32 %v1283, %v1298
        %v1305 = vadd.f32 %v1286, %v1298
        %v1306 = vadd.f32 %v1289, %v1298
        %v1307 = vadd.f32 %v1292, %v1298
        %v1308 = vxor.u32 %v1300, 2147483648
        %v1309 = vxor.u32 %v1301, 2147483648
        %v1310 = vxor.u32 %v1302, 2147483648
        %v1311 = vxor.u32 %v1303, 2147483648
        %v1312 = vxor.u32 %v1304, 2147483648
        %v1313 = vxor.u32 %v1305, 2147483648
        %v1314 = vxor.u32 %v1306, 2147483648
        %v1315 = vxor.u32 %v1307, 2147483648
        %v1316 = vmul.f32 %v1308, 1.442695
        %v1317 = vpow.pop %v1316
        %v1318 = vmul.f32 %v1309, 1.442695
        %v1319 = vpow.pop %v1318
        %v1320 = vmul.f32 %v1310, 1.442695
        %v1321 = vpow.pop %v1320
        %v1322 = vmul.f32 %v1311, 1.442695
        %v1323 = vpow.pop %v1322
        %v1324 = vmul.f32 %v1312, 1.442695
        %v1325 = vpow.pop %v1324
        %v1326 = vmul.f32 %v1313, 1.442695
        %v1327 = vpow.pop %v1326
        %v1328 = vmul.f32 %v1314, 1.442695
        %v1329 = vpow.pop %v1328
        %v1330 = vmul.f32 %v1315, 1.442695
        %v1331 = vpow.pop %v1330
        %v1332 = vadd.f32 %v1317, 1.0
        %v1333 = vadd.f32 %v1319, 1.0
        %v1334 = vadd.f32 %v1321, 1.0
        %v1335 = vadd.f32 %v1323, 1.0
        %v1336 = vadd.f32 %v1325, 1.0
        %v1337 = vadd.f32 %v1327, 1.0
        %v1338 = vadd.f32 %v1329, 1.0
        %v1339 = vadd.f32 %v1331, 1.0
        %v1340 = vrcp.pop %v1332
        %v1341 = vmul.f32 1.0, %v1340
        %v1342 = vrcp.pop %v1333
        %v1343 = vmul.f32 1.0, %v1342
        %v1344 = vrcp.pop %v1334
        %v1345 = vmul.f32 1.0, %v1344
        %v1346 = vrcp.pop %v1335
        %v1347 = vmul.f32 1.0, %v1346
        %v1348 = vrcp.pop %v1336
        %v1349 = vmul.f32 1.0, %v1348
        %v1350 = vrcp.pop %v1337
        %v1351 = vmul.f32 1.0, %v1350
        %v1352 = vrcp.pop %v1338
        %v1353 = vmul.f32 1.0, %v1352
        %v1354 = vrcp.pop %v1339
        %v1355 = vmul.f32 1.0, %v1354
        %vm1356 = vcmask 7168
        %v1357 = vsel %vm1356, %v1341, 0.0
        %v1358 = vsel %vm1356, %v1343, 0.0
        %v1359 = vadd.f32 %v1357, %v1358
        %v1360 = vsel %vm1356, %v1345, 0.0
        %v1361 = vadd.f32 %v1359, %v1360
        %v1362 = vsel %vm1356, %v1347, 0.0
        %v1363 = vadd.f32 %v1361, %v1362
        %v1364 = vsel %vm1356, %v1349, 0.0
        %v1365 = vadd.f32 %v1363, %v1364
        %v1366 = vsel %vm1356, %v1351, 0.0
        %v1367 = vadd.f32 %v1365, %v1366
        %v1368 = vsel %vm1356, %v1353, 0.0
        %v1369 = vadd.f32 %v1367, %v1368
        %v1370 = vsel %vm1356, %v1355, 0.0
        %v1371 = vadd.f32 %v1369, %v1370
        %v1372 = vunpack.c.l.bf16 %v456
        %v1373 = vunpack.c.h.bf16 %v456
        %v1374 = vunpack.c.l.bf16 %v457
        %v1375 = vunpack.c.h.bf16 %v457
        %v1376 = vunpack.c.l.bf16 %v458
        %v1377 = vunpack.c.h.bf16 %v458
        %v1378 = vunpack.c.l.bf16 %v459
        %v1379 = vunpack.c.h.bf16 %v459
        %v1380 = vunpack.c.l.bf16 %v460
        %v1381 = vunpack.c.h.bf16 %v460
        %v1382 = vunpack.c.l.bf16 %v461
        %v1383 = vunpack.c.h.bf16 %v461
        %v1384 = vunpack.c.l.bf16 %v462
        %v1385 = vunpack.c.h.bf16 %v462
        %v1386 = vunpack.c.l.bf16 %v463
        %v1387 = vunpack.c.h.bf16 %v463
        %v1388 = vunpack.c.l.bf16 %v464
        %v1389 = vunpack.c.h.bf16 %v464
        %v1390 = vunpack.c.l.bf16 %v465
        %v1391 = vunpack.c.h.bf16 %v465
        %v1392 = vunpack.c.l.bf16 %v466
        %v1393 = vunpack.c.h.bf16 %v466
        %v1394 = vunpack.c.l.bf16 %v467
        %v1395 = vunpack.c.h.bf16 %v467
        %v1396 = vunpack.c.l.bf16 %v468
        %v1397 = vunpack.c.h.bf16 %v468
        %v1398 = vunpack.c.l.bf16 %v469
        %v1399 = vunpack.c.h.bf16 %v469
        %v1400 = vunpack.c.l.bf16 %v470
        %v1401 = vunpack.c.h.bf16 %v470
        %v1402 = vunpack.c.l.bf16 %v471
        %v1403 = vunpack.c.h.bf16 %v471
        %v1404 = vrot.slane %v1372, 4
        %v1405 = vadd.f32 %v1372, %v1404
        %v1406 = vrot.slane %v1405, 2
        %v1407 = vadd.f32 %v1405, %v1406
        %v1408 = vrot.slane %v1407, 1
        %v1409 = vadd.f32 %v1407, %v1408
        %v1410 = vrot.slane %v1373, 4
        %v1411 = vadd.f32 %v1373, %v1410
        %v1412 = vrot.slane %v1411, 2
        %v1413 = vadd.f32 %v1411, %v1412
        %v1414 = vrot.slane %v1413, 1
        %v1415 = vadd.f32 %v1413, %v1414
        %v1416 = vrot.slane %v1374, 4
        %v1417 = vadd.f32 %v1374, %v1416
        %v1418 = vrot.slane %v1417, 2
        %v1419 = vadd.f32 %v1417, %v1418
        %v1420 = vrot.slane %v1419, 1
        %v1421 = vadd.f32 %v1419, %v1420
        %v1422 = vrot.slane %v1375, 4
        %v1423 = vadd.f32 %v1375, %v1422
        %v1424 = vrot.slane %v1423, 2
        %v1425 = vadd.f32 %v1423, %v1424
        %v1426 = vrot.slane %v1425, 1
        %v1427 = vadd.f32 %v1425, %v1426
        %v1428 = vrot.slane %v1376, 4
        %v1429 = vadd.f32 %v1376, %v1428
        %v1430 = vrot.slane %v1429, 2
        %v1431 = vadd.f32 %v1429, %v1430
        %v1432 = vrot.slane %v1431, 1
        %v1433 = vadd.f32 %v1431, %v1432
        %v1434 = vrot.slane %v1377, 4
        %v1435 = vadd.f32 %v1377, %v1434
        %v1436 = vrot.slane %v1435, 2
        %v1437 = vadd.f32 %v1435, %v1436
        %v1438 = vrot.slane %v1437, 1
        %v1439 = vadd.f32 %v1437, %v1438
        %v1440 = vrot.slane %v1378, 4
        %v1441 = vadd.f32 %v1378, %v1440
        %v1442 = vrot.slane %v1441, 2
        %v1443 = vadd.f32 %v1441, %v1442
        %v1444 = vrot.slane %v1443, 1
        %v1445 = vadd.f32 %v1443, %v1444
        %v1446 = vrot.slane %v1379, 4
        %v1447 = vadd.f32 %v1379, %v1446
        %v1448 = vrot.slane %v1447, 2
        %v1449 = vadd.f32 %v1447, %v1448
        %v1450 = vrot.slane %v1449, 1
        %v1451 = vadd.f32 %v1449, %v1450
        %v1452 = vrot.slane %v1380, 4
        %v1453 = vadd.f32 %v1380, %v1452
        %v1454 = vrot.slane %v1453, 2
        %v1455 = vadd.f32 %v1453, %v1454
        %v1456 = vrot.slane %v1455, 1
        %v1457 = vadd.f32 %v1455, %v1456
        %v1458 = vrot.slane %v1381, 4
        %v1459 = vadd.f32 %v1381, %v1458
        %v1460 = vrot.slane %v1459, 2
        %v1461 = vadd.f32 %v1459, %v1460
        %v1462 = vrot.slane %v1461, 1
        %v1463 = vadd.f32 %v1461, %v1462
        %v1464 = vrot.slane %v1382, 4
        %v1465 = vadd.f32 %v1382, %v1464
        %v1466 = vrot.slane %v1465, 2
        %v1467 = vadd.f32 %v1465, %v1466
        %v1468 = vrot.slane %v1467, 1
        %v1469 = vadd.f32 %v1467, %v1468
        %v1470 = vrot.slane %v1383, 4
        %v1471 = vadd.f32 %v1383, %v1470
        %v1472 = vrot.slane %v1471, 2
        %v1473 = vadd.f32 %v1471, %v1472
        %v1474 = vrot.slane %v1473, 1
        %v1475 = vadd.f32 %v1473, %v1474
        %v1476 = vrot.slane %v1384, 4
        %v1477 = vadd.f32 %v1384, %v1476
        %v1478 = vrot.slane %v1477, 2
        %v1479 = vadd.f32 %v1477, %v1478
        %v1480 = vrot.slane %v1479, 1
        %v1481 = vadd.f32 %v1479, %v1480
        %v1482 = vrot.slane %v1385, 4
        %v1483 = vadd.f32 %v1385, %v1482
        %v1484 = vrot.slane %v1483, 2
        %v1485 = vadd.f32 %v1483, %v1484
        %v1486 = vrot.slane %v1485, 1
        %v1487 = vadd.f32 %v1485, %v1486
        %v1488 = vrot.slane %v1386, 4
        %v1489 = vadd.f32 %v1386, %v1488
        %v1490 = vrot.slane %v1489, 2
        %v1491 = vadd.f32 %v1489, %v1490
        %v1492 = vrot.slane %v1491, 1
        %v1493 = vadd.f32 %v1491, %v1492
        %v1494 = vrot.slane %v1387, 4
        %v1495 = vadd.f32 %v1387, %v1494
        %v1496 = vrot.slane %v1495, 2
        %v1497 = vadd.f32 %v1495, %v1496
        %v1498 = vrot.slane %v1497, 1
        %v1499 = vadd.f32 %v1497, %v1498
        %v1500 = vrot.slane %v1388, 4
        %v1501 = vadd.f32 %v1388, %v1500
        %v1502 = vrot.slane %v1501, 2
        %v1503 = vadd.f32 %v1501, %v1502
        %v1504 = vrot.slane %v1503, 1
        %v1505 = vadd.f32 %v1503, %v1504
        %v1506 = vrot.slane %v1389, 4
        %v1507 = vadd.f32 %v1389, %v1506
        %v1508 = vrot.slane %v1507, 2
        %v1509 = vadd.f32 %v1507, %v1508
        %v1510 = vrot.slane %v1509, 1
        %v1511 = vadd.f32 %v1509, %v1510
        %v1512 = vrot.slane %v1390, 4
        %v1513 = vadd.f32 %v1390, %v1512
        %v1514 = vrot.slane %v1513, 2
        %v1515 = vadd.f32 %v1513, %v1514
        %v1516 = vrot.slane %v1515, 1
        %v1517 = vadd.f32 %v1515, %v1516
        %v1518 = vrot.slane %v1391, 4
        %v1519 = vadd.f32 %v1391, %v1518
        %v1520 = vrot.slane %v1519, 2
        %v1521 = vadd.f32 %v1519, %v1520
        %v1522 = vrot.slane %v1521, 1
        %v1523 = vadd.f32 %v1521, %v1522
        %v1524 = vrot.slane %v1392, 4
        %v1525 = vadd.f32 %v1392, %v1524
        %v1526 = vrot.slane %v1525, 2
        %v1527 = vadd.f32 %v1525, %v1526
        %v1528 = vrot.slane %v1527, 1
        %v1529 = vadd.f32 %v1527, %v1528
        %v1530 = vrot.slane %v1393, 4
        %v1531 = vadd.f32 %v1393, %v1530
        %v1532 = vrot.slane %v1531, 2
        %v1533 = vadd.f32 %v1531, %v1532
        %v1534 = vrot.slane %v1533, 1
        %v1535 = vadd.f32 %v1533, %v1534
        %v1536 = vrot.slane %v1394, 4
        %v1537 = vadd.f32 %v1394, %v1536
        %v1538 = vrot.slane %v1537, 2
        %v1539 = vadd.f32 %v1537, %v1538
        %v1540 = vrot.slane %v1539, 1
        %v1541 = vadd.f32 %v1539, %v1540
        %v1542 = vrot.slane %v1395, 4
        %v1543 = vadd.f32 %v1395, %v1542
        %v1544 = vrot.slane %v1543, 2
        %v1545 = vadd.f32 %v1543, %v1544
        %v1546 = vrot.slane %v1545, 1
        %v1547 = vadd.f32 %v1545, %v1546
        %v1548 = vrot.slane %v1396, 4
        %v1549 = vadd.f32 %v1396, %v1548
        %v1550 = vrot.slane %v1549, 2
        %v1551 = vadd.f32 %v1549, %v1550
        %v1552 = vrot.slane %v1551, 1
        %v1553 = vadd.f32 %v1551, %v1552
        %v1554 = vrot.slane %v1397, 4
        %v1555 = vadd.f32 %v1397, %v1554
        %v1556 = vrot.slane %v1555, 2
        %v1557 = vadd.f32 %v1555, %v1556
        %v1558 = vrot.slane %v1557, 1
        %v1559 = vadd.f32 %v1557, %v1558
        %v1560 = vrot.slane %v1398, 4
        %v1561 = vadd.f32 %v1398, %v1560
        %v1562 = vrot.slane %v1561, 2
        %v1563 = vadd.f32 %v1561, %v1562
        %v1564 = vrot.slane %v1563, 1
        %v1565 = vadd.f32 %v1563, %v1564
        %v1566 = vrot.slane %v1399, 4
        %v1567 = vadd.f32 %v1399, %v1566
        %v1568 = vrot.slane %v1567, 2
        %v1569 = vadd.f32 %v1567, %v1568
        %v1570 = vrot.slane %v1569, 1
        %v1571 = vadd.f32 %v1569, %v1570
        %v1572 = vrot.slane %v1400, 4
        %v1573 = vadd.f32 %v1400, %v1572
        %v1574 = vrot.slane %v1573, 2
        %v1575 = vadd.f32 %v1573, %v1574
        %v1576 = vrot.slane %v1575, 1
        %v1577 = vadd.f32 %v1575, %v1576
        %v1578 = vrot.slane %v1401, 4
        %v1579 = vadd.f32 %v1401, %v1578
        %v1580 = vrot.slane %v1579, 2
        %v1581 = vadd.f32 %v1579, %v1580
        %v1582 = vrot.slane %v1581, 1
        %v1583 = vadd.f32 %v1581, %v1582
        %v1584 = vrot.slane %v1402, 4
        %v1585 = vadd.f32 %v1402, %v1584
        %v1586 = vrot.slane %v1585, 2
        %v1587 = vadd.f32 %v1585, %v1586
        %v1588 = vrot.slane %v1587, 1
        %v1589 = vadd.f32 %v1587, %v1588
        %v1590 = vrot.slane %v1403, 4
        %v1591 = vadd.f32 %v1403, %v1590
        %v1592 = vrot.slane %v1591, 2
        %v1593 = vadd.f32 %v1591, %v1592
        %v1594 = vrot.slane %v1593, 1
        %v1595 = vadd.f32 %v1593, %v1594
        %1597 = vset.pattern.permute.xlu0 0
        %1598 = vperm.xlu0 %1597, %v1371
        %v1599 = vpop.permute.xlu0 %1598
        %vm1633 = vcmask 1041409
        %v1634 = vsel %vm1633, %v1433, %v1409
        %vm1635 = vcmask 1042434
        %v1636 = vsel %vm1635, %v1457, %v1634
        %vm1637 = vcmask 1043459
        %v1638 = vsel %vm1637, %v1481, %v1636
        %vm1639 = vcmask 1044484
        %v1640 = vsel %vm1639, %v1505, %v1638
        %vm1641 = vcmask 1045509
        %v1642 = vsel %vm1641, %v1529, %v1640
        %vm1643 = vcmask 1046534
        %v1644 = vsel %vm1643, %v1553, %v1642
        %vm1645 = vcmask 1047559
        %v1646 = vsel %vm1645, %v1577, %v1644
        %v1647 = vsel %vm1633, %v1439, %v1415
        %v1648 = vsel %vm1635, %v1463, %v1647
        %v1649 = vsel %vm1637, %v1487, %v1648
        %v1650 = vsel %vm1639, %v1511, %v1649
        %v1651 = vsel %vm1641, %v1535, %v1650
        %v1652 = vsel %vm1643, %v1559, %v1651
        %v1653 = vsel %vm1645, %v1583, %v1652
        %v1654 = vsel %vm1633, %v1445, %v1421
        %v1655 = vsel %vm1635, %v1469, %v1654
        %v1656 = vsel %vm1637, %v1493, %v1655
        %v1657 = vsel %vm1639, %v1517, %v1656
        %v1658 = vsel %vm1641, %v1541, %v1657
        %v1659 = vsel %vm1643, %v1565, %v1658
        %v1660 = vsel %vm1645, %v1589, %v1659
        %v1661 = vsel %vm1633, %v1451, %v1427
        %v1662 = vsel %vm1635, %v1475, %v1661
        %v1663 = vsel %vm1637, %v1499, %v1662
        %v1664 = vsel %vm1639, %v1523, %v1663
        %v1665 = vsel %vm1641, %v1547, %v1664
        %v1666 = vsel %vm1643, %v1571, %v1665
        %v1667 = vsel %vm1645, %v1595, %v1666
        %v1672 = vmul.f32 %v1599, %v1646
        %v1673 = vmul.f32 %v1599, %v1653
        %v1674 = vmul.f32 %v1599, %v1660
        %v1675 = vmul.f32 %v1599, %v1667
        %v1676 = vrot.slane %v1672, 4
        %v1677 = vadd.f32 %v1672, %v1676
        %v1678 = vrot.slane %v1677, 2
        %v1679 = vadd.f32 %v1677, %v1678
        %v1680 = vrot.slane %v1679, 1
        %v1681 = vadd.f32 %v1679, %v1680
        %v1682 = vrot.slane %v1673, 4
        %v1683 = vadd.f32 %v1673, %v1682
        %v1684 = vrot.slane %v1683, 2
        %v1685 = vadd.f32 %v1683, %v1684
        %v1686 = vrot.slane %v1685, 1
        %v1687 = vadd.f32 %v1685, %v1686
        %v1688 = vrot.slane %v1674, 4
        %v1689 = vadd.f32 %v1674, %v1688
        %v1690 = vrot.slane %v1689, 2
        %v1691 = vadd.f32 %v1689, %v1690
        %v1692 = vrot.slane %v1691, 1
        %v1693 = vadd.f32 %v1691, %v1692
        %v1694 = vrot.slane %v1675, 4
        %v1695 = vadd.f32 %v1675, %v1694
        %v1696 = vrot.slane %v1695, 2
        %v1697 = vadd.f32 %v1695, %v1696
        %v1698 = vrot.slane %v1697, 1
        %v1699 = vadd.f32 %v1697, %v1698
        %v1700 = vsel %vm1356, %v1371, 0.0
        %v1701 = vrot.slane %v1700, 4
        %v1702 = vadd.f32 %v1700, %v1701
        %v1703 = vrot.slane %v1702, 2
        %v1704 = vadd.f32 %v1702, %v1703
        %v1705 = vrot.slane %v1704, 1
        %v1706 = vadd.f32 %v1704, %v1705
        %v1707 = vrcp.pop %v1706
        %1709 = vset.pattern.permute.xlu0 0
        %1710 = vperm.xlu0 %1709, %v1707
        %v1711 = vpop.permute.xlu0 %1710
        %v1713 = vmul.f32 %v1681, %v1711
        %v1714 = vmul.f32 %v1687, %v1711
        %v1715 = vmul.f32 %v1693, %v1711
        %v1716 = vmul.f32 %v1699, %v1711
        %v1717 = vld [vmem:[#allocation3] sm:$0xff]
        %v1718 = vld [vmem:[#allocation3 + $0x8] sm:$0xff]
        %v1719 = vld [vmem:[#allocation3 + $0x10] sm:$0xff]
        %v1720 = vld [vmem:[#allocation3 + $0x18] sm:$0xff]
        %v1721 = vld [vmem:[#allocation3 + $0x20] sm:$0xff]
        %v1722 = vld [vmem:[#allocation3 + $0x28] sm:$0xff]
        %v1723 = vld [vmem:[#allocation3 + $0x30] sm:$0xff]
        %v1724 = vld [vmem:[#allocation3 + $0x38] sm:$0xff]
        %v1725 = vld [vmem:[#allocation3 + $0x40] sm:$0xff]
        %v1726 = vld [vmem:[#allocation3 + $0x48] sm:$0xff]
        %v1727 = vld [vmem:[#allocation3 + $0x50] sm:$0xff]
        %v1728 = vld [vmem:[#allocation3 + $0x58] sm:$0xff]
        %v1729 = vld [vmem:[#allocation3 + $0x60] sm:$0xff]
        %v1730 = vld [vmem:[#allocation3 + $0x68] sm:$0xff]
        %v1731 = vld [vmem:[#allocation3 + $0x70] sm:$0xff]
        %v1732 = vld [vmem:[#allocation3 + $0x78] sm:$0xff]
        %v1733 = vld [vmem:[#allocation3 + $0x80] sm:$0xff]
        %v1734 = vld [vmem:[#allocation3 + $0x88] sm:$0xff]
        %v1735 = vld [vmem:[#allocation3 + $0x90] sm:$0xff]
        %v1736 = vld [vmem:[#allocation3 + $0x98] sm:$0xff]
        %v1737 = vld [vmem:[#allocation3 + $0xa0] sm:$0xff]
        %v1738 = vld [vmem:[#allocation3 + $0xa8] sm:$0xff]
        %v1739 = vld [vmem:[#allocation3 + $0xb0] sm:$0xff]
        %v1740 = vld [vmem:[#allocation3 + $0xb8] sm:$0xff]
        %v1741 = vld [vmem:[#allocation3 + $0xc0] sm:$0xff]
        %v1742 = vld [vmem:[#allocation3 + $0xc8] sm:$0xff]
        %v1743 = vld [vmem:[#allocation3 + $0xd0] sm:$0xff]
        %v1744 = vld [vmem:[#allocation3 + $0xd8] sm:$0xff]
        %v1745 = vld [vmem:[#allocation3 + $0xe0] sm:$0xff]
        %v1746 = vld [vmem:[#allocation3 + $0xe8] sm:$0xff]
        %v1747 = vld [vmem:[#allocation3 + $0xf0] sm:$0xff]
        %v1748 = vld [vmem:[#allocation3 + $0xf8] sm:$0xff]
        %v1749 = vld [vmem:[#allocation3 + $0x100] sm:$0xff]
        %v1750 = vld [vmem:[#allocation3 + $0x108] sm:$0xff]
        %v1751 = vld [vmem:[#allocation3 + $0x110] sm:$0xff]
        %v1752 = vld [vmem:[#allocation3 + $0x118] sm:$0xff]
        %v1753 = vld [vmem:[#allocation3 + $0x120] sm:$0xff]
        %v1754 = vld [vmem:[#allocation3 + $0x128] sm:$0xff]
        %v1755 = vld [vmem:[#allocation3 + $0x130] sm:$0xff]
        %v1756 = vld [vmem:[#allocation3 + $0x138] sm:$0xff]
        %v1757 = vld [vmem:[#allocation3 + $0x140] sm:$0xff]
        %v1758 = vld [vmem:[#allocation3 + $0x148] sm:$0xff]
        %v1759 = vld [vmem:[#allocation3 + $0x150] sm:$0xff]
        %v1760 = vld [vmem:[#allocation3 + $0x158] sm:$0xff]
        %v1761 = vld [vmem:[#allocation3 + $0x160] sm:$0xff]
        %v1762 = vld [vmem:[#allocation3 + $0x168] sm:$0xff]
        %v1763 = vld [vmem:[#allocation3 + $0x170] sm:$0xff]
        %v1764 = vld [vmem:[#allocation3 + $0x178] sm:$0xff]
        %v1765 = vld [vmem:[#allocation3 + $0x180] sm:$0xff]
        %v1766 = vld [vmem:[#allocation3 + $0x188] sm:$0xff]
        %v1767 = vld [vmem:[#allocation3 + $0x190] sm:$0xff]
        %v1768 = vld [vmem:[#allocation3 + $0x198] sm:$0xff]
        %v1769 = vld [vmem:[#allocation3 + $0x1a0] sm:$0xff]
        %v1770 = vld [vmem:[#allocation3 + $0x1a8] sm:$0xff]
        %v1771 = vld [vmem:[#allocation3 + $0x1b0] sm:$0xff]
        %v1772 = vld [vmem:[#allocation3 + $0x1b8] sm:$0xff]
        %v1773 = vld [vmem:[#allocation3 + $0x1c0] sm:$0xff]
        %v1774 = vld [vmem:[#allocation3 + $0x1c8] sm:$0xff]
        %v1775 = vld [vmem:[#allocation3 + $0x1d0] sm:$0xff]
        %v1776 = vld [vmem:[#allocation3 + $0x1d8] sm:$0xff]
        %v1777 = vld [vmem:[#allocation3 + $0x1e0] sm:$0xff]
        %v1778 = vld [vmem:[#allocation3 + $0x1e8] sm:$0xff]
        %v1779 = vld [vmem:[#allocation3 + $0x1f0] sm:$0xff]
        %v1780 = vld [vmem:[#allocation3 + $0x1f8] sm:$0xff]
        %v1781 = vld [vmem:[#allocation3 + $0x200] sm:$0xff]
        %v1782 = vld [vmem:[#allocation3 + $0x208] sm:$0xff]
        %v1783 = vld [vmem:[#allocation3 + $0x210] sm:$0xff]
        %v1784 = vld [vmem:[#allocation3 + $0x218] sm:$0xff]
        %v1785 = vld [vmem:[#allocation3 + $0x220] sm:$0xff]
        %v1786 = vld [vmem:[#allocation3 + $0x228] sm:$0xff]
        %v1787 = vld [vmem:[#allocation3 + $0x230] sm:$0xff]
        %v1788 = vld [vmem:[#allocation3 + $0x238] sm:$0xff]
        %v1789 = vld [vmem:[#allocation3 + $0x240] sm:$0xff]
        %v1790 = vld [vmem:[#allocation3 + $0x248] sm:$0xff]
        %v1791 = vld [vmem:[#allocation3 + $0x250] sm:$0xff]
        %v1792 = vld [vmem:[#allocation3 + $0x258] sm:$0xff]
        %v1793 = vld [vmem:[#allocation3 + $0x260] sm:$0xff]
        %v1794 = vld [vmem:[#allocation3 + $0x268] sm:$0xff]
        %v1795 = vld [vmem:[#allocation3 + $0x270] sm:$0xff]
        %v1796 = vld [vmem:[#allocation3 + $0x278] sm:$0xff]
        %v1797 = vld [vmem:[#allocation3 + $0x280] sm:$0xff]
        %v1798 = vld [vmem:[#allocation3 + $0x288] sm:$0xff]
        %v1799 = vld [vmem:[#allocation3 + $0x290] sm:$0xff]
        %v1800 = vld [vmem:[#allocation3 + $0x298] sm:$0xff]
        %v1801 = vld [vmem:[#allocation3 + $0x2a0] sm:$0xff]
        %v1802 = vld [vmem:[#allocation3 + $0x2a8] sm:$0xff]
        %v1803 = vld [vmem:[#allocation3 + $0x2b0] sm:$0xff]
        %v1804 = vld [vmem:[#allocation3 + $0x2b8] sm:$0xff]
        %v1805 = vld [vmem:[#allocation3 + $0x2c0] sm:$0xff]
        %v1806 = vld [vmem:[#allocation3 + $0x2c8] sm:$0xff]
        %v1807 = vld [vmem:[#allocation3 + $0x2d0] sm:$0xff]
        %v1808 = vld [vmem:[#allocation3 + $0x2d8] sm:$0xff]
        %v1809 = vld [vmem:[#allocation3 + $0x2e0] sm:$0xff]
        %v1810 = vld [vmem:[#allocation3 + $0x2e8] sm:$0xff]
        %v1811 = vld [vmem:[#allocation3 + $0x2f0] sm:$0xff]
        %v1812 = vld [vmem:[#allocation3 + $0x2f8] sm:$0xff]
        %v1813 = vld [vmem:[#allocation3 + $0x300] sm:$0xff]
        %v1814 = vld [vmem:[#allocation3 + $0x308] sm:$0xff]
        %v1815 = vld [vmem:[#allocation3 + $0x310] sm:$0xff]
        %v1816 = vld [vmem:[#allocation3 + $0x318] sm:$0xff]
        %v1817 = vld [vmem:[#allocation3 + $0x320] sm:$0xff]
        %v1818 = vld [vmem:[#allocation3 + $0x328] sm:$0xff]
        %v1819 = vld [vmem:[#allocation3 + $0x330] sm:$0xff]
        %v1820 = vld [vmem:[#allocation3 + $0x338] sm:$0xff]
        %v1821 = vld [vmem:[#allocation3 + $0x340] sm:$0xff]
        %v1822 = vld [vmem:[#allocation3 + $0x348] sm:$0xff]
        %v1823 = vld [vmem:[#allocation3 + $0x350] sm:$0xff]
        %v1824 = vld [vmem:[#allocation3 + $0x358] sm:$0xff]
        %v1825 = vld [vmem:[#allocation3 + $0x360] sm:$0xff]
        %v1826 = vld [vmem:[#allocation3 + $0x368] sm:$0xff]
        %v1827 = vld [vmem:[#allocation3 + $0x370] sm:$0xff]
        %v1828 = vld [vmem:[#allocation3 + $0x378] sm:$0xff]
        %v1829 = vld [vmem:[#allocation3 + $0x380] sm:$0xff]
        %v1830 = vld [vmem:[#allocation3 + $0x388] sm:$0xff]
        %v1831 = vld [vmem:[#allocation3 + $0x390] sm:$0xff]
        %v1832 = vld [vmem:[#allocation3 + $0x398] sm:$0xff]
        %v1833 = vld [vmem:[#allocation3 + $0x3a0] sm:$0xff]
        %v1834 = vld [vmem:[#allocation3 + $0x3a8] sm:$0xff]
        %v1835 = vld [vmem:[#allocation3 + $0x3b0] sm:$0xff]
        %v1836 = vld [vmem:[#allocation3 + $0x3b8] sm:$0xff]
        %v1837 = vld [vmem:[#allocation3 + $0x3c0] sm:$0xff]
        %v1838 = vld [vmem:[#allocation3 + $0x3c8] sm:$0xff]
        %v1839 = vld [vmem:[#allocation3 + $0x3d0] sm:$0xff]
        %v1840 = vld [vmem:[#allocation3 + $0x3d8] sm:$0xff]
        %v1841 = vld [vmem:[#allocation3 + $0x3e0] sm:$0xff]
        %v1842 = vld [vmem:[#allocation3 + $0x3e8] sm:$0xff]
        %v1843 = vld [vmem:[#allocation3 + $0x3f0] sm:$0xff]
        %v1844 = vld [vmem:[#allocation3 + $0x3f8] sm:$0xff]
        %v1845 = vld [vmem:[%s10] sm:$0x3]
        %v1847 = vlaneseq
        %v1848 = vshrl.u32 %v1847, 7
        %v1849 = vsub.s32 0, %v1848
        %v1850 = vrot.slane %v1845, %v1849
        %v1851 = vlaneseq
        %v1852 = vshrl.u32 %v1851, 7
        %v1853 = vsub.s32 1, %v1852
        %v1854 = vrot.slane %v1845, %v1853
        %1857 = vmatprep.subr.mxu0 %v1748
        %1858 = vmatpush1.msra.mxu0 %v1747
        %1859 = vmatprep.subr.mxu0 %v1746
        %1860 = vmatpush1.msra.mxu0 %v1745
        %1861 = vmatprep.subr.mxu0 %v1744
        %1862 = vmatpush1.msra.mxu0 %v1743
        %1863 = vmatprep.subr.mxu0 %v1742
        %1864 = vmatpush1.msra.mxu0 %v1741
        %1865 = vmatprep.subr.mxu0 %v1740
        %1866 = vmatpush1.msra.mxu0 %v1739
        %1867 = vmatprep.subr.mxu0 %v1738
        %1868 = vmatpush1.msra.mxu0 %v1737
        %1869 = vmatprep.subr.mxu0 %v1736
        %1870 = vmatpush1.msra.mxu0 %v1735
        %1871 = vmatprep.subr.mxu0 %v1734
        %1872 = vmatpush1.msra.mxu0 %v1733
        %1873 = vmatprep.subr.mxu0 %v1732
        %1874 = vmatpush1.msra.mxu0 %v1731
        %1875 = vmatprep.subr.mxu0 %v1730
        %1876 = vmatpush1.msra.mxu0 %v1729
        %1877 = vmatprep.subr.mxu0 %v1728
        %1878 = vmatpush1.msra.mxu0 %v1727
        %1879 = vmatprep.subr.mxu0 %v1726
        %1880 = vmatpush1.msra.mxu0 %v1725
        %1881 = vmatprep.subr.mxu0 %v1724
        %1882 = vmatpush1.msra.mxu0 %v1723
        %1883 = vmatprep.subr.mxu0 %v1722
        %1884 = vmatpush1.msra.mxu0 %v1721
        %1885 = vmatprep.subr.mxu0 %v1720
        %1886 = vmatpush1.msra.mxu0 %v1719
        %1887 = vmatprep.subr.mxu0 %v1718
        %1888 = vmatpush1.msra.mxu0 %v1717
        %1889 = vmatprep.subr.mxu0 %v1780
        %1890 = vmatpush2.msra.mxu0 %v1779
        %1891 = vmatprep.subr.mxu0 %v1778
        %1892 = vmatpush2.msra.mxu0 %v1777
        %1893 = vmatprep.subr.mxu0 %v1776
        %1894 = vmatpush2.msra.mxu0 %v1775
        %1895 = vmatprep.subr.mxu0 %v1774
        %1896 = vmatpush2.msra.mxu0 %v1773
        %1897 = vmatprep.subr.mxu0 %v1772
        %1898 = vmatpush2.msra.mxu0 %v1771
        %1899 = vmatprep.subr.mxu0 %v1770
        %1900 = vmatpush2.msra.mxu0 %v1769
        %1901 = vmatprep.subr.mxu0 %v1768
        %1902 = vmatpush2.msra.mxu0 %v1767
        %1903 = vmatprep.subr.mxu0 %v1766
        %1904 = vmatpush2.msra.mxu0 %v1765
        %1905 = vmatprep.subr.mxu0 %v1764
        %1906 = vmatpush2.msra.mxu0 %v1763
        %1907 = vmatprep.subr.mxu0 %v1762
        %1908 = vmatpush2.msra.mxu0 %v1761
        %1909 = vmatprep.subr.mxu0 %v1760
        %1910 = vmatpush2.msra.mxu0 %v1759
        %1911 = vmatprep.subr.mxu0 %v1758
        %1912 = vmatpush2.msra.mxu0 %v1757
        %1913 = vmatprep.subr.mxu0 %v1756
        %1914 = vmatpush2.msra.mxu0 %v1755
        %1915 = vmatprep.subr.mxu0 %v1754
        %1916 = vmatpush2.msra.mxu0 %v1753
        %1917 = vmatprep.subr.mxu0 %v1752
        %1918 = vmatpush2.msra.mxu0 %v1751
        %1919 = vmatprep.subr.mxu0 %v1750
        %1920 = vmatpush2.msra.mxu0 %v1749
        %1921 = vmatprep.mubr.f32.mxu0 %v1714
        %1922 = vmatmul.mubr.f32.gmra.mxu0 %v1713
        %v1923 = vpop.f32.mrf.mxu0
        %v1924 = vadd.f32 %v1850, %v1923
        %v1925 = vpop.f32.mrf.mxu0
        %v1926 = vadd.f32 %v1854, %v1925
        %1927 = vdwg.mxu0
        %1928 = vmatprep.subr.mxu0 %v1812
        %1929 = vmatpush1.msra.mxu0 %v1811
        %1930 = vmatprep.subr.mxu0 %v1810
        %1931 = vmatpush1.msra.mxu0 %v1809
        %1932 = vmatprep.subr.mxu0 %v1808
        %1933 = vmatpush1.msra.mxu0 %v1807
        %1934 = vmatprep.subr.mxu0 %v1806
        %1935 = vmatpush1.msra.mxu0 %v1805
        %1936 = vmatprep.subr.mxu0 %v1804
        %1937 = vmatpush1.msra.mxu0 %v1803
        %1938 = vmatprep.subr.mxu0 %v1802
        %1939 = vmatpush1.msra.mxu0 %v1801
        %1940 = vmatprep.subr.mxu0 %v1800
        %1941 = vmatpush1.msra.mxu0 %v1799
        %1942 = vmatprep.subr.mxu0 %v1798
        %1943 = vmatpush1.msra.mxu0 %v1797
        %1944 = vmatprep.subr.mxu0 %v1796
        %1945 = vmatpush1.msra.mxu0 %v1795
        %1946 = vmatprep.subr.mxu0 %v1794
        %1947 = vmatpush1.msra.mxu0 %v1793
        %1948 = vmatprep.subr.mxu0 %v1792
        %1949 = vmatpush1.msra.mxu0 %v1791
        %1950 = vmatprep.subr.mxu0 %v1790
        %1951 = vmatpush1.msra.mxu0 %v1789
        %1952 = vmatprep.subr.mxu0 %v1788
        %1953 = vmatpush1.msra.mxu0 %v1787
        %1954 = vmatprep.subr.mxu0 %v1786
        %1955 = vmatpush1.msra.mxu0 %v1785
        %1956 = vmatprep.subr.mxu0 %v1784
        %1957 = vmatpush1.msra.mxu0 %v1783
        %1958 = vmatprep.subr.mxu0 %v1782
        %1959 = vmatpush1.msra.mxu0 %v1781
        %1960 = vmatprep.subr.mxu0 %v1844
        %1961 = vmatpush2.msra.mxu0 %v1843
        %1962 = vmatprep.subr.mxu0 %v1842
        %1963 = vmatpush2.msra.mxu0 %v1841
        %1964 = vmatprep.subr.mxu0 %v1840
        %1965 = vmatpush2.msra.mxu0 %v1839
        %1966 = vmatprep.subr.mxu0 %v1838
        %1967 = vmatpush2.msra.mxu0 %v1837
        %1968 = vmatprep.subr.mxu0 %v1836
        %1969 = vmatpush2.msra.mxu0 %v1835
        %1970 = vmatprep.subr.mxu0 %v1834
        %1971 = vmatpush2.msra.mxu0 %v1833
        %1972 = vmatprep.subr.mxu0 %v1832
        %1973 = vmatpush2.msra.mxu0 %v1831
        %1974 = vmatprep.subr.mxu0 %v1830
        %1975 = vmatpush2.msra.mxu0 %v1829
        %1976 = vmatprep.subr.mxu0 %v1828
        %1977 = vmatpush2.msra.mxu0 %v1827
        %1978 = vmatprep.subr.mxu0 %v1826
        %1979 = vmatpush2.msra.mxu0 %v1825
        %1980 = vmatprep.subr.mxu0 %v1824
        %1981 = vmatpush2.msra.mxu0 %v1823
        %1982 = vmatprep.subr.mxu0 %v1822
        %1983 = vmatpush2.msra.mxu0 %v1821
        %1984 = vmatprep.subr.mxu0 %v1820
        %1985 = vmatpush2.msra.mxu0 %v1819
        %1986 = vmatprep.subr.mxu0 %v1818
        %1987 = vmatpush2.msra.mxu0 %v1817
        %1988 = vmatprep.subr.mxu0 %v1816
        %1989 = vmatpush2.msra.mxu0 %v1815
        %1990 = vmatprep.subr.mxu0 %v1814
        %1991 = vmatpush2.msra.mxu0 %v1813
        %1992 = vmatprep.mubr.f32.mxu0 %v1716
        %1993 = vmatmul.mubr.f32.gmra.mxu0 %v1715
        %v1994 = vpop.f32.mrf.mxu0
        %v1995 = vadd.f32 %v1924, %v1994
        %v1996 = vpop.f32.mrf.mxu0
        %v1997 = vadd.f32 %v1926, %v1996
        %1998 = vdwg.mxu0
        %v1999 = vld [vmem:[%s11] sm:$0xff]
        %v2000 = vld [vmem:[%s11 + $0x8] sm:$0xff]
        %v2001 = vld [vmem:[%s11 + $0x10] sm:$0xff]
        %v2002 = vld [vmem:[%s11 + $0x18] sm:$0xff]
        %v2003 = vld [vmem:[%s11 + $0x20] sm:$0xff]
        %v2004 = vld [vmem:[%s11 + $0x28] sm:$0xff]
        %v2005 = vld [vmem:[%s11 + $0x30] sm:$0xff]
        %v2006 = vld [vmem:[%s11 + $0x38] sm:$0xff]
        %v2007 = vld [vmem:[%s11 + $0x40] sm:$0xff]
        %v2008 = vld [vmem:[%s11 + $0x48] sm:$0xff]
        %v2009 = vld [vmem:[%s11 + $0x50] sm:$0xff]
        %v2010 = vld [vmem:[%s11 + $0x58] sm:$0xff]
        %v2011 = vld [vmem:[%s11 + $0x60] sm:$0xff]
        %v2012 = vld [vmem:[%s11 + $0x68] sm:$0xff]
        %v2013 = vld [vmem:[%s11 + $0x70] sm:$0xff]
        %v2014 = vld [vmem:[%s11 + $0x78] sm:$0xff]
        %v2015 = vld [vmem:[%s11 + $0x80] sm:$0xff]
        %v2016 = vld [vmem:[%s11 + $0x88] sm:$0xff]
        %v2017 = vld [vmem:[%s11 + $0x90] sm:$0xff]
        %v2018 = vld [vmem:[%s11 + $0x98] sm:$0xff]
        %v2019 = vld [vmem:[%s11 + $0xa0] sm:$0xff]
        %v2020 = vld [vmem:[%s11 + $0xa8] sm:$0xff]
        %v2021 = vld [vmem:[%s11 + $0xb0] sm:$0xff]
        %v2022 = vld [vmem:[%s11 + $0xb8] sm:$0xff]
        %v2023 = vld [vmem:[%s11 + $0xc0] sm:$0xff]
        %v2024 = vld [vmem:[%s11 + $0xc8] sm:$0xff]
        %v2025 = vld [vmem:[%s11 + $0xd0] sm:$0xff]
        %v2026 = vld [vmem:[%s11 + $0xd8] sm:$0xff]
        %v2027 = vld [vmem:[%s11 + $0xe0] sm:$0xff]
        %v2028 = vld [vmem:[%s11 + $0xe8] sm:$0xff]
        %v2029 = vld [vmem:[%s11 + $0xf0] sm:$0xff]
        %v2030 = vld [vmem:[%s11 + $0xf8] sm:$0xff]
        %v2031 = vld [vmem:[%s12] sm:$0x1]
        %2032 = vmatprep.subr.mxu0 0.0
        %2033 = vmatpush1.msra.mxu0 %v2014
        %2034 = vmatprep.subr.mxu0 0.0
        %2035 = vmatpush1.msra.mxu0 %v2013
        %2036 = vmatprep.subr.mxu0 0.0
        %2037 = vmatpush1.msra.mxu0 %v2012
        %2038 = vmatprep.subr.mxu0 0.0
        %2039 = vmatpush1.msra.mxu0 %v2011
        %2040 = vmatprep.subr.mxu0 0.0
        %2041 = vmatpush1.msra.mxu0 %v2010
        %2042 = vmatprep.subr.mxu0 0.0
        %2043 = vmatpush1.msra.mxu0 %v2009
        %2044 = vmatprep.subr.mxu0 0.0
        %2045 = vmatpush1.msra.mxu0 %v2008
        %2046 = vmatprep.subr.mxu0 0.0
        %2047 = vmatpush1.msra.mxu0 %v2007
        %2048 = vmatprep.subr.mxu0 0.0
        %2049 = vmatpush1.msra.mxu0 %v2006
        %2050 = vmatprep.subr.mxu0 0.0
        %2051 = vmatpush1.msra.mxu0 %v2005
        %2052 = vmatprep.subr.mxu0 0.0
        %2053 = vmatpush1.msra.mxu0 %v2004
        %2054 = vmatprep.subr.mxu0 0.0
        %2055 = vmatpush1.msra.mxu0 %v2003
        %2056 = vmatprep.subr.mxu0 0.0
        %2057 = vmatpush1.msra.mxu0 %v2002
        %2058 = vmatprep.subr.mxu0 0.0
        %2059 = vmatpush1.msra.mxu0 %v2001
        %2060 = vmatprep.subr.mxu0 0.0
        %2061 = vmatpush1.msra.mxu0 %v2000
        %2062 = vmatprep.subr.mxu0 0.0
        %2063 = vmatpush1.msra.mxu0 %v1999
        %2064 = vmatprep.subr.mxu0 0.0
        %2065 = vmatpush2.msra.mxu0 %v2030
        %2066 = vmatprep.subr.mxu0 0.0
        %2067 = vmatpush2.msra.mxu0 %v2029
        %2068 = vmatprep.subr.mxu0 0.0
        %2069 = vmatpush2.msra.mxu0 %v2028
        %2070 = vmatprep.subr.mxu0 0.0
        %2071 = vmatpush2.msra.mxu0 %v2027
        %2072 = vmatprep.subr.mxu0 0.0
        %2073 = vmatpush2.msra.mxu0 %v2026
        %2074 = vmatprep.subr.mxu0 0.0
        %2075 = vmatpush2.msra.mxu0 %v2025
        %2076 = vmatprep.subr.mxu0 0.0
        %2077 = vmatpush2.msra.mxu0 %v2024
        %2078 = vmatprep.subr.mxu0 0.0
        %2079 = vmatpush2.msra.mxu0 %v2023
        %2080 = vmatprep.subr.mxu0 0.0
        %2081 = vmatpush2.msra.mxu0 %v2022
        %2082 = vmatprep.subr.mxu0 0.0
        %2083 = vmatpush2.msra.mxu0 %v2021
        %2084 = vmatprep.subr.mxu0 0.0
        %2085 = vmatpush2.msra.mxu0 %v2020
        %2086 = vmatprep.subr.mxu0 0.0
        %2087 = vmatpush2.msra.mxu0 %v2019
        %2088 = vmatprep.subr.mxu0 0.0
        %2089 = vmatpush2.msra.mxu0 %v2018
        %2090 = vmatprep.subr.mxu0 0.0
        %2091 = vmatpush2.msra.mxu0 %v2017
        %2092 = vmatprep.subr.mxu0 0.0
        %2093 = vmatpush2.msra.mxu0 %v2016
        %2094 = vmatprep.subr.mxu0 0.0
        %2095 = vmatpush2.msra.mxu0 %v2015
        %2096 = vmatprep.mubr.f32.mxu0 %v1997
        %2097 = vmatmul.mubr.f32.gmra.mxu0 %v1995
        %v2098 = vpop.f32.mrf.mxu0
        %v2099 = vadd.f32 %v2031, %v2098
        %v2100 = vpop.f32.mrf.mxu0
        %2101 = vdwg.mxu0
        %vm2102 = vcmask 32768
        %2103 = vst.msk [vmem:[%s449] sm:$0x1] %vm2102, %v2099
        %s2104 = sand.u32 %s316, 1
        %s2105 = scalar_lea.sflag [#allocation5], %s2104
        %s2106 = sand.u32 %s316, 1
        %s2107 = scalar_lea.vmem [#allocation6], %s2106
        // Predicated region
        $region77: #{tpu_custom_call.1} parent=71 // pred_check
          %p2108 = pneg %p326
        $region78: #{tpu_custom_call.1} parent=71 // pred_check_branch
          %2110 = sbr.rel (%p2108) target = $region80
        $region79: #{tpu_custom_call.1} parent=71 // pred_region
          %s2112 = ssub.s32 16, 16
          %2113 = vsyncadd %s2105, %s2112
          %s2114 = smul.addr %s30, 16
          %s2115 = scalar_lea.hbm %s13, %s2114
          %s2117 = sshll.u32 %s2107, 4
          %s2118 = int_to_ptr.vmem [resolvable:$true] %s2117
          %2120 = dma.vmem_to_hbm [thread:$0]  %s2118, 16, %s2115, %s2105
        $region80: #{tpu_custom_call.1} parent=71 // pred_fallthru
          _
      $region72: #{tpu_custom_call.1} parent=5 // pred_fallthru
        _
      %p2121 = scmp.le.s32.totalorder 2, %s25
      // Predicated region
      $region81: #{tpu_custom_call.1} parent=5 // pred_check
        %p2122 = pneg %p2121
      $region82: #{tpu_custom_call.1} parent=5 // pred_check_branch
        %2124 = sbr.rel (%p2122) target = $region84
      $region83: #{tpu_custom_call.1} parent=5 // pred_region
        %s2125 = ssub.s32 %s25, 2
        // Predicated region
        $region85: #{tpu_custom_call.1} parent=83 // pred_check
          %p2126 = pneg %p332
        $region86: #{tpu_custom_call.1} parent=83 // pred_check_branch
          %2128 = sbr.rel (%p2126) target = $region88
        $region87: #{tpu_custom_call.1} parent=83 // pred_region
          %s2129 = sand.u32 %s317, 1
          %s2130 = scalar_lea.sflag [#allocation5], %s2129
          %s2131 = sand.u32 %s317, 1
          %s2132 = scalar_lea.vmem [#allocation6], %s2131
          %2133 = dma.done %s2130, 16
        $region88: #{tpu_custom_call.1} parent=83 // pred_fallthru
          _
      $region84: #{tpu_custom_call.1} parent=5 // pred_fallthru
        _
    $region6: #{tpu_custom_call.1} parent=1 // loop_footer
      %s29 = sadd.s32 1, %s25
    $region7: #{tpu_custom_call.1} parent=1 // loop_footer_branch
      %24 = sbr.rel target = $region3
    $region8: #{tpu_custom_call.1} parent=1 // loop_exit
      _
    %2134 = vsyncpa [#allocation4], 1
    %s2135 = scalar_lea.sflag [#allocation4], 1
    %2136 = vsyncpa %s2135, 1
    %2137 = vsyncpa [#allocation5], 1
    %s2138 = scalar_lea.sflag [#allocation5], 1
    %2139 = vsyncpa %s2138, 1

</llo_original>
